<compile_context>
chip_gen: v7x
topology: tpu7x:2x2x1
jax: 0.10.0
libtpu: 0.0.40
codegen_flags: <defaults>
</compile_context>

<pallas_src>
import jax
import jax.numpy as jnp
from jax.experimental import pallas as pl
from jax.experimental.pallas import tpu as pltpu


def conv1x1_kernel(w_ref, b_ref, x_ref, o_ref):
    # w_ref: [co_tile, C_in] bf16 (resident per C_out block)
    # b_ref: [co_tile, 1]    f32
    # x_ref: [C_in, tm]      f32 activation tile
    # o_ref: [co_tile, tm]   f32 output tile
    acc = jnp.dot(
        w_ref[...],
        x_ref[...].astype(jnp.bfloat16),
        preferred_element_type=jnp.float32,
    )
    o_ref[...] = (acc + b_ref[...]).astype(o_ref.dtype)


def conv2d_1x1(x_nchw, weight, bias, *, tm_max=512, co_split=2):
    """1x1 stride-1 conv. x: [N, C_in, H, W]; weight: [C_out, C_in, 1, 1]; bias: [C_out]."""
    N, C_in, H, W = x_nchw.shape
    C_out = weight.shape[0]
    HW = H * W

    # M tile: no padding of HW. Edge blocks rely on masked OOB stores, which is
    # safe here because the op is column-independent.
    tm = min(tm_max, HW)
    m_blocks = pl.cdiv(HW, tm)

    # Split C_out across the leading "parallel" axis (v7x megacore). Keep each
    # block a multiple of 16 rows so the bf16 weight block stays tile-aligned.
    if co_split > 1 and C_out % co_split == 0 and (C_out // co_split) % 16 == 0:
        co_tile = C_out // co_split
    else:
        co_tile = C_out
    co_blocks = C_out // co_tile

    x3d = x_nchw.reshape(N, C_in, HW)                       # f32 activations, true size
    w2d = weight.reshape(C_out, C_in).astype(jnp.bfloat16)  # halve dominant HBM read
    b2d = bias.reshape(C_out, 1).astype(jnp.float32)        # f32 bias

    act_isz = jnp.dtype(x3d.dtype).itemsize
    cost = pl.CostEstimate(
        flops=2 * N * HW * C_in * C_out,
        transcendentals=0,
        bytes_accessed=(N * C_in * HW * act_isz     # activations (f32, true size)
                        + C_out * C_in * 2          # weight (bf16)
                        + C_out * 4                 # bias (f32)
                        + N * C_out * HW * 4),      # output (f32)
    )

    grid = (co_blocks, N, m_blocks)

    out3d = pl.pallas_call(
        conv1x1_kernel,
        out_shape=jax.ShapeDtypeStruct((N, C_out, HW), jnp.float32),
        grid=grid,
        in_specs=[
            pl.BlockSpec((co_tile, C_in), lambda c, n, m: (c, 0)),    # weight block
            pl.BlockSpec((co_tile, 1), lambda c, n, m: (c, 0)),       # bias block
            pl.BlockSpec((None, C_in, tm), lambda c, n, m: (n, 0, m)),  # activation tile
        ],
        out_specs=pl.BlockSpec((None, co_tile, tm), lambda c, n, m: (n, c, m)),
        compiler_params=pltpu.CompilerParams(
            dimension_semantics=("parallel", "parallel", "parallel"),
            vmem_limit_bytes=32 * 1024 * 1024,
        ),
        cost_estimate=cost,
    )(w2d, b2d, x3d)

    return out3d.reshape(N, C_out, H, W)


if __name__ == "__main__":
    key = jax.random.PRNGKey(0)
    kx, kw, kb = jax.random.split(key, 3)

    # Shapes implied by the module: Conv2d(3840, 160, 1x1) on input [1, 3840, 1, 1].
    N, C_in, H, W = 1, 3840, 1, 1
    C_out = 160

    x = jax.random.normal(kx, (N, C_in, H, W), dtype=jnp.float32)
    fan_in = float(C_in)  # 1x1 kernel
    bound = 1.0 / (fan_in ** 0.5)
    weight = jax.random.uniform(kw, (C_out, C_in, 1, 1), jnp.float32, -bound, bound)
    bias = jax.random.uniform(kb, (C_out,), jnp.float32, -bound, bound)

    out = jax.block_until_ready(conv2d_1x1(x, weight, bias))

    # Reference check (plain JAX, f32). Tolerance widened for the bf16 weight /
    # activation multiply (f32 MXU accumulation keeps the error small).
    ref = (
        jnp.einsum("nchw,oc->nohw", x, weight.reshape(C_out, C_in))
        + bias.reshape(1, C_out, 1, 1)
    )
    assert out.shape == (N, C_out, H, W)
    assert jnp.allclose(out, ref, atol=5e-2, rtol=5e-2)

    print("KERNEL_OK")
</pallas_src>

<mosaic_0001>
module attributes {stable_mosaic.version = 11 : i64} {
  func.func @conv1x1_kernel(%arg0: i32, %arg1: i32, %arg2: i32, %arg3: memref<80x3840xbf16, #tpu.memory_space<vmem>>, %arg4: memref<80x1xf32, #tpu.memory_space<vmem>>, %arg5: memref<1x3840x1xf32, #tpu.memory_space<vmem>>, %arg6: memref<1x80x1xf32, #tpu.memory_space<vmem>>) attributes {dimension_semantics = [#tpu.dimension_semantics<parallel>, #tpu.dimension_semantics<parallel>, #tpu.dimension_semantics<parallel>], iteration_bounds = array<i64: 2, 1, 1>, scalar_prefetch = 0 : i64, scratch_operands = 0 : i64, tpu.core_type = #tpu.core_type<tc>, window_params = [{transform_indices = @transform_0, window_bounds = array<i64: 80, 3840>}, {transform_indices = @transform_1, window_bounds = array<i64: 80, 1>}, {transform_indices = @transform_2, window_bounds = array<i64: 1, 3840, 1>}, {transform_indices = @transform_3, window_bounds = array<i64: 1, 80, 1>}]} {
    %c0 = arith.constant 0 : index
    %c0_0 = arith.constant 0 : index
    %0 = vector.load %arg3[%c0, %c0_0] : memref<80x3840xbf16, #tpu.memory_space<vmem>>, vector<80x3840xbf16>
    %c0_1 = arith.constant 0 : index
    %c0_2 = arith.constant 0 : index
    %c0_3 = arith.constant 0 : index
    %1 = vector.load %arg5[%c0_1, %c0_2, %c0_3] : memref<1x3840x1xf32, #tpu.memory_space<vmem>>, vector<1x3840x1xf32>
    %2 = vector.shape_cast %1 : vector<1x3840x1xf32> to vector<3840x1xf32>
    %3 = arith.truncf %2 : vector<3840x1xf32> to vector<3840x1xbf16>
    %cst = arith.constant dense<0.000000e+00> : vector<80x1xf32>
    %4 = tpu.matmul %0, %3, %cst {dimension_numbers = #tpu.dot_dimension_numbers<[1], [0], [0], [1], [0, 0, 1, 1], [], []>} : vector<80x3840xbf16>, vector<3840x1xbf16>, vector<80x1xf32> -> vector<80x1xf32>
    %c0_4 = arith.constant 0 : index
    %c0_5 = arith.constant 0 : index
    %5 = vector.load %arg4[%c0_4, %c0_5] : memref<80x1xf32, #tpu.memory_space<vmem>>, vector<80x1xf32>
    %6 = arith.addf %4, %5 : vector<80x1xf32>
    %c0_6 = arith.constant 0 : index
    %c0_7 = arith.constant 0 : index
    %c0_8 = arith.constant 0 : index
    %7 = vector.load %arg6[%c0_6, %c0_7, %c0_8] : memref<1x80x1xf32, #tpu.memory_space<vmem>>, vector<1x80x1xf32>
    %8 = vector.shape_cast %7 : vector<1x80x1xf32> to vector<80x1xf32>
    %9 = vector.shape_cast %6 : vector<80x1xf32> to vector<1x80x1xf32>
    tpu.vector_store %arg6[%c0_6, %c0_7, %c0_8], %9 {strides = array<i32>} : memref<1x80x1xf32, #tpu.memory_space<vmem>>, vector<1x80x1xf32>,
    return
  }
  func.func @transform_0(%arg0: i32, %arg1: i32, %arg2: i32) -> (i32, i32) {
    %c0_i32 = arith.constant 0 : i32
    %c0_i32_0 = arith.constant 0 : i32
    return %arg0, %c0_i32 : i32, i32
  }
  func.func @transform_1(%arg0: i32, %arg1: i32, %arg2: i32) -> (i32, i32) {
    %c0_i32 = arith.constant 0 : i32
    %c0_i32_0 = arith.constant 0 : i32
    return %arg0, %c0_i32 : i32, i32
  }
  func.func @transform_2(%arg0: i32, %arg1: i32, %arg2: i32) -> (i32, i32, i32) {
    %c0_i32 = arith.constant 0 : i32
    %c0_i32_0 = arith.constant 0 : i32
    return %arg1, %c0_i32, %arg2 : i32, i32, i32
  }
  func.func @transform_3(%arg0: i32, %arg1: i32, %arg2: i32) -> (i32, i32, i32) {
    %c0_i32 = arith.constant 0 : i32
    return %arg1, %arg0, %arg2 : i32, i32, i32
  }
}

</mosaic_0001>

<llo_original>
// kernel: tpu_custom_call.1
$region0: #{tpu_custom_call.1}
  #allocation0 [shape = 'u32[]', space=smem, size = 0x4, offset = 0x4, fixed_abs, tag = 'smem constant byte address 0x4 - core index']
  #allocation1 [shape = 'u32[144,128]{1,0:T(1,128)}', space=vmem, size = 0x12000, scoped, tag = 'internal scratch']
  %s0 = inlined_call_operand.vmem [shape: bf16[160,3840], index: 0, kind: input, shape index: {}]
  %s1 = inlined_call_operand.vmem [shape: f32[160,1], index: 1, kind: input, shape index: {}]
  %s2 = inlined_call_operand.vmem [shape: f32[1,3840,1], index: 2, kind: input, shape index: {}]
  %s3 = inlined_call_operand.vmem [shape: f32[1,160,1], index: 3, kind: output, shape index: {}]
  %s4 = sld [smem:[#allocation0]]
  $region45: #{tpu_custom_call.1} parent=0
    _
  %s6 = ssub.s32 1, %s4
  %s7 = scalar_select 0, %s6, %s4
  loop: start=0, step=1, limit=4
  $region2: #{tpu_custom_call.1} parent=0 // loop_pre_header
    _
  $region3: #{tpu_custom_call.1} parent=0 // loop_header
    %s9 = sphi 0, %s13
    %p10 = scmp.ge.s32.totalorder %s9, 4
    %s16 = sphi 0, %s35
    %s17 = sphi 0, %s31
    %s18 = sphi 0, %s27
    %s19 = sphi 0, %s16
    %s20 = sphi 0, %s17
    %s21 = sphi 0, %s18
    %s22 = sphi 0, %s19
    %s23 = sphi 0, %s20
    %s24 = sphi 0, %s21
    %s38 = sphi 0, %s40
    %s41 = sphi 0, %s38
    %s42 = sphi 0, %s41
    %s58 = sphi 0, %s42
    %s64 = sphi 0, %s66
    %s67 = sphi 0, %s64
    %s68 = sphi 0, %s67
    %s84 = sphi 0, %s68
    %s92 = sphi 0, %s94
    %s95 = sphi 0, %s92
    %s96 = sphi 0, %s95
    %s112 = sphi 0, %s96
    %s122 = sphi 0, %s124
    %s125 = sphi 0, %s122
    %s126 = sphi 0, %s125
    %s142 = sphi 0, %s126
  $region4: #{tpu_custom_call.1} parent=0 // loop_header_branch
    %12 = sbr.rel (%p10) target = $region8
  $region5: #{tpu_custom_call.1} parent=0 // loop_body
    %s14 = ssub.s32 %s9, 1
    %s15 = ssub.s32 %s9, 2
    %s25 = sadd.s32 1, %s18
    %p26 = scmp.ge.s32.totalorder %s25, 1
    %s27 = scalar_select %p26, 0, %s25
    %s28 = sadd.s32 1, %s17
    %s29 = scalar_select %p26, %s28, %s17
    %p30 = scmp.ge.s32.totalorder %s29, 1
    %s31 = scalar_select %p30, 0, %s29
    %s32 = sadd.s32 1, %s16
    %s33 = scalar_select %p30, %s32, %s16
    %p34 = scmp.ge.s32.totalorder %s33, 2
    %s35 = scalar_select %p34, 0, %s33
    %s36 = ssub.s32 %s16, %s35
    %p37 = scmp.eq.s32.totalorder %s36, 0
    %s39 = sadd.s32 %s38, 1
    %s40 = scalar_select %p37, %s38, %s39
    %p43 = pneg %p37
    %p44 = scmp.eq.s32.totalorder %s9, 1
    %p45 = por %p43, %p44
    %p46 = scmp.ne.s32.totalorder %s38, %s41
    %p47 = scmp.eq.s32.totalorder %s9, 0
    %p48 = por %p46, %p47
    %p49 = scmp.ne.s32.totalorder %s38, %s41
    %p50 = scmp.eq.s32.totalorder %s14, 1
    %p51 = por %p49, %p50
    %p52 = scmp.ne.s32.totalorder %s41, %s42
    %p53 = scmp.eq.s32.totalorder %s14, 0
    %p54 = por %p52, %p53
    %p55 = scmp.ne.s32.totalorder %s41, %s42
    %p56 = scmp.eq.s32.totalorder %s15, 1
    %p57 = por %p55, %p56
    %p59 = scmp.ne.s32.totalorder %s42, %s58
    %p60 = scmp.eq.s32.totalorder %s15, 0
    %p61 = por %p59, %p60
    %s62 = ssub.s32 %s16, %s35
    %p63 = scmp.eq.s32.totalorder %s62, 0
    %s65 = sadd.s32 %s64, 1
    %s66 = scalar_select %p63, %s64, %s65
    %p69 = pneg %p63
    %p70 = scmp.eq.s32.totalorder %s9, 1
    %p71 = por %p69, %p70
    %p72 = scmp.ne.s32.totalorder %s64, %s67
    %p73 = scmp.eq.s32.totalorder %s9, 0
    %p74 = por %p72, %p73
    %p75 = scmp.ne.s32.totalorder %s64, %s67
    %p76 = scmp.eq.s32.totalorder %s14, 1
    %p77 = por %p75, %p76
    %p78 = scmp.ne.s32.totalorder %s67, %s68
    %p79 = scmp.eq.s32.totalorder %s14, 0
    %p80 = por %p78, %p79
    %p81 = scmp.ne.s32.totalorder %s67, %s68
    %p82 = scmp.eq.s32.totalorder %s15, 1
    %p83 = por %p81, %p82
    %p85 = scmp.ne.s32.totalorder %s68, %s84
    %p86 = scmp.eq.s32.totalorder %s15, 0
    %p87 = por %p85, %p86
    %s88 = ssub.s32 %s17, %s31
    %s89 = ssub.s32 %s18, %s27
    %s90 = sor.u32 %s88, %s89
    %p91 = scmp.eq.s32.totalorder %s90, 0
    %s93 = sadd.s32 %s92, 1
    %s94 = scalar_select %p91, %s92, %s93
    %p97 = pneg %p91
    %p98 = scmp.eq.s32.totalorder %s9, 1
    %p99 = por %p97, %p98
    %p100 = scmp.ne.s32.totalorder %s92, %s95
    %p101 = scmp.eq.s32.totalorder %s9, 0
    %p102 = por %p100, %p101
    %p103 = scmp.ne.s32.totalorder %s92, %s95
    %p104 = scmp.eq.s32.totalorder %s14, 1
    %p105 = por %p103, %p104
    %p106 = scmp.ne.s32.totalorder %s95, %s96
    %p107 = scmp.eq.s32.totalorder %s14, 0
    %p108 = por %p106, %p107
    %p109 = scmp.ne.s32.totalorder %s95, %s96
    %p110 = scmp.eq.s32.totalorder %s15, 1
    %p111 = por %p109, %p110
    %p113 = scmp.ne.s32.totalorder %s96, %s112
    %p114 = scmp.eq.s32.totalorder %s15, 0
    %p115 = por %p113, %p114
    %s116 = ssub.s32 %s17, %s31
    %s117 = ssub.s32 %s16, %s35
    %s118 = sor.u32 %s116, %s117
    %s119 = ssub.s32 %s18, %s27
    %s120 = sor.u32 %s118, %s119
    %p121 = scmp.eq.s32.totalorder %s120, 0
    %s123 = sadd.s32 %s122, 1
    %s124 = scalar_select %p121, %s122, %s123
    %p127 = pneg %p121
    %p128 = scmp.eq.s32.totalorder %s9, 1
    %p129 = por %p127, %p128
    %p130 = scmp.ne.s32.totalorder %s122, %s125
    %p131 = scmp.eq.s32.totalorder %s9, 0
    %p132 = por %p130, %p131
    %p133 = scmp.ne.s32.totalorder %s122, %s125
    %p134 = scmp.eq.s32.totalorder %s14, 1
    %p135 = por %p133, %p134
    %p136 = scmp.ne.s32.totalorder %s125, %s126
    %p137 = scmp.eq.s32.totalorder %s14, 0
    %p138 = por %p136, %p137
    %p139 = scmp.ne.s32.totalorder %s125, %s126
    %p140 = scmp.eq.s32.totalorder %s15, 1
    %p141 = por %p139, %p140
    %p143 = scmp.ne.s32.totalorder %s126, %s142
    %p144 = scmp.eq.s32.totalorder %s15, 0
    %p145 = por %p143, %p144
    %p146 = scmp.le.s32.totalorder 1, %s9
    %p147 = scmp.lt.s32.totalorder %s9, 3
    %p148 = pnand %p146, %p147
    %p149 = pneg %p148
    // Predicated region
    $region9: #{tpu_custom_call.1} parent=5 // pred_check
      _
    $region10: #{tpu_custom_call.1} parent=5 // pred_check_branch
      %151 = sbr.rel (%p148) target = $region12
    $region11: #{tpu_custom_call.1} parent=5 // pred_region
      %s152 = ssub.s32 %s9, 1
      // Predicated region
      $region13: #{tpu_custom_call.1} parent=11 // pred_check
        %p153 = pneg %p108
      $region14: #{tpu_custom_call.1} parent=11 // pred_check_branch
        %155 = sbr.rel (%p153) target = $region16
      $region15: #{tpu_custom_call.1} parent=11 // pred_region
        %p156 = scmp.lt.s32.totalorder %s20, 0
        %s157 = scalar_select %p156, %s20, 0
        %p158 = scmp.lt.s32.totalorder %s21, 0
        %s159 = scalar_select %p158, %s21, 0
        %s160 = smul.addr %s157, 480
        %s161 = sadd.s32 %s159, %s160
        %s162 = smul.addr %s161, 8
        %s163 = scalar_lea.vmem %s2, %s162
      $region16: #{tpu_custom_call.1} parent=11 // pred_fallthru
        _
    $region12: #{tpu_custom_call.1} parent=5 // pred_fallthru
      _
    %p164 = scmp.lt.s32.totalorder %s9, 2
    // Predicated region
    $region17: #{tpu_custom_call.1} parent=5 // pred_check
      %p165 = pneg %p164
    $region18: #{tpu_custom_call.1} parent=5 // pred_check_branch
      %167 = sbr.rel (%p165) target = $region20
    $region19: #{tpu_custom_call.1} parent=5 // pred_region
      // Predicated region
      $region21: #{tpu_custom_call.1} parent=19 // pred_check
        %p168 = pneg %p48
      $region22: #{tpu_custom_call.1} parent=19 // pred_check_branch
        %170 = sbr.rel (%p168) target = $region24
      $region23: #{tpu_custom_call.1} parent=19 // pred_region
        %s171 = smul.u32 10, %s16
        %p172 = scmp.lt.s32.totalorder %s171, 19
        %s173 = scalar_select %p172, %s171, 19
        %s174 = smul.addr %s173, 30
        %s175 = smul.addr %s174, 4
        %s176 = scalar_lea.vmem %s0, %s175
        %s177 = smul.u32 10, %s16
      $region24: #{tpu_custom_call.1} parent=19 // pred_fallthru
        _
      // Predicated region
      $region25: #{tpu_custom_call.1} parent=19 // pred_check
        %p178 = pneg %p74
      $region26: #{tpu_custom_call.1} parent=19 // pred_check_branch
        %180 = sbr.rel (%p178) target = $region28
      $region27: #{tpu_custom_call.1} parent=19 // pred_region
        %s181 = smul.u32 10, %s16
        %p182 = scmp.lt.s32.totalorder %s181, 19
        %s183 = scalar_select %p182, %s181, 19
        %s184 = smul.addr %s183, 8
        %s185 = scalar_lea.vmem %s1, %s184
        %s186 = smul.u32 10, %s16
      $region28: #{tpu_custom_call.1} parent=19 // pred_fallthru
        _
    $region20: #{tpu_custom_call.1} parent=5 // pred_fallthru
      _
    %p187 = scmp.le.s32.totalorder 1, %s9
    %p188 = scmp.lt.s32.totalorder %s9, 3
    %p189 = pnand %p187, %p188
    %p190 = pneg %p189
    // Predicated region
    $region29: #{tpu_custom_call.1} parent=5 // pred_check
      _
    $region30: #{tpu_custom_call.1} parent=5 // pred_check_branch
      %192 = sbr.rel (%p189) target = $region32
    $region31: #{tpu_custom_call.1} parent=5 // pred_region
      %s193 = ssub.s32 %s9, 1
      %s194 = smul.u32 10, %s19
      %p195 = scmp.lt.s32.totalorder %s194, 19
      %s196 = scalar_select %p195, %s194, 19
      %s197 = smul.addr %s196, 30
      %s198 = smul.addr %s197, 4
      %s199 = scalar_lea.vmem %s0, %s198
      %p200 = pneg %p54
      %p201 = pneg %p51
      %s202 = smul.u32 10, %s19
      %p203 = scmp.lt.s32.totalorder %s202, 19
      %s204 = scalar_select %p203, %s202, 19
      %s205 = smul.addr %s204, 8
      %s206 = scalar_lea.vmem %s1, %s205
      %p207 = pneg %p80
      %p208 = pneg %p77
      %p209 = scmp.lt.s32.totalorder %s20, 0
      %s210 = scalar_select %p209, %s20, 0
      %p211 = scmp.lt.s32.totalorder %s21, 0
      %s212 = scalar_select %p211, %s21, 0
      %s213 = smul.addr %s210, 480
      %s214 = sadd.s32 %s212, %s213
      %s215 = smul.addr %s214, 8
      %s216 = scalar_lea.vmem %s2, %s215
      %p217 = pneg %p108
      %p218 = pneg %p105
      %p219 = pneg %p138
      %p220 = pneg %p135
      %s221 = smul.u32 10, %s19
      %p222 = scmp.lt.s32.totalorder %s20, 0
      %s223 = scalar_select %p222, %s20, 0
      %p224 = scmp.lt.s32.totalorder %s221, 19
      %s225 = scalar_select %p224, %s221, 19
      %p226 = scmp.lt.s32.totalorder %s21, 0
      %s227 = scalar_select %p226, %s21, 0
      %s228 = sadd.s32 %s227, %s225
      %s229 = smul.addr %s223, 20
      %s230 = sadd.s32 %s228, %s229
      %s231 = smul.addr %s230, 8
      %s232 = scalar_lea.vmem %s3, %s231
      %s233 = smul.u32 10, %s19
      %p234 = scmp.lt.s32.totalorder %s233, 19
      %s235 = scalar_select %p234, %s233, 19
      %s236 = smul.addr %s235, 30
      %s237 = smul.addr %s236, 4
      %s238 = scalar_lea.vmem %s0, %s237
      %s239 = smul.u32 10, %s19
      %s240 = smul.u32 10, %s19
      %p241 = scmp.lt.s32.totalorder %s240, 19
      %s242 = scalar_select %p241, %s240, 19
      %s243 = smul.addr %s242, 8
      %s244 = scalar_lea.vmem %s1, %s243
      %s245 = smul.u32 10, %s19
      %p246 = scmp.lt.s32.totalorder %s20, 0
      %s247 = scalar_select %p246, %s20, 0
      %p248 = scmp.lt.s32.totalorder %s21, 0
      %s249 = scalar_select %p248, %s21, 0
      %s250 = smul.addr %s247, 480
      %s251 = sadd.s32 %s249, %s250
      %s252 = smul.addr %s251, 8
      %s253 = scalar_lea.vmem %s2, %s252
      %s254 = smul.u32 10, %s19
      %p255 = scmp.lt.s32.totalorder %s20, 0
      %s256 = scalar_select %p255, %s20, 0
      %p257 = scmp.lt.s32.totalorder %s254, 19
      %s258 = scalar_select %p257, %s254, 19
      %p259 = scmp.lt.s32.totalorder %s21, 0
      %s260 = scalar_select %p259, %s21, 0
      %s261 = sadd.s32 %s260, %s258
      %s262 = smul.addr %s256, 20
      %s263 = sadd.s32 %s261, %s262
      %s264 = smul.addr %s263, 8
      %s265 = scalar_lea.vmem %s3, %s264
      %s266 = smul.u32 10, %s19
      %v268 = vld [vmem:[%s238] sm:$0xff]
      %v269 = vld [vmem:[%s238 + $0x8] sm:$0xff]
      %v270 = vld [vmem:[%s238 + $0x10] sm:$0xff]
      %v271 = vld [vmem:[%s238 + $0x18] sm:$0xff]
      %v272 = vld [vmem:[%s238 + $0x20] sm:$0xff]
      %v273 = vld [vmem:[%s238 + $0x28] sm:$0xff]
      %v274 = vld [vmem:[%s238 + $0x30] sm:$0xff]
      %v275 = vld [vmem:[%s238 + $0x38] sm:$0xff]
      %v276 = vld [vmem:[%s238 + $0x40] sm:$0xff]
      %v277 = vld [vmem:[%s238 + $0x48] sm:$0xff]
      %v278 = vld [vmem:[%s238 + $0x50] sm:$0xff]
      %v279 = vld [vmem:[%s238 + $0x58] sm:$0xff]
      %v280 = vld [vmem:[%s238 + $0x60] sm:$0xff]
      %v281 = vld [vmem:[%s238 + $0x68] sm:$0xff]
      %v282 = vld [vmem:[%s238 + $0x70] sm:$0xff]
      %v283 = vld [vmem:[%s238 + $0x78] sm:$0xff]
      %v284 = vld [vmem:[%s238 + $0x80] sm:$0xff]
      %v285 = vld [vmem:[%s238 + $0x88] sm:$0xff]
      %v286 = vld [vmem:[%s238 + $0x90] sm:$0xff]
      %v287 = vld [vmem:[%s238 + $0x98] sm:$0xff]
      %v288 = vld [vmem:[%s238 + $0xa0] sm:$0xff]
      %v289 = vld [vmem:[%s238 + $0xa8] sm:$0xff]
      %v290 = vld [vmem:[%s238 + $0xb0] sm:$0xff]
      %v291 = vld [vmem:[%s238 + $0xb8] sm:$0xff]
      %v292 = vld [vmem:[%s238 + $0xc0] sm:$0xff]
      %v293 = vld [vmem:[%s238 + $0xc8] sm:$0xff]
      %v294 = vld [vmem:[%s238 + $0xd0] sm:$0xff]
      %v295 = vld [vmem:[%s238 + $0xd8] sm:$0xff]
      %v296 = vld [vmem:[%s238 + $0xe0] sm:$0xff]
      %v297 = vld [vmem:[%s238 + $0xe8] sm:$0xff]
      %v298 = vld [vmem:[%s238 + $0xf0] sm:$0xff]
      %v299 = vld [vmem:[%s238 + $0xf8] sm:$0xff]
      %v300 = vld [vmem:[%s238 + $0x100] sm:$0xff]
      %v301 = vld [vmem:[%s238 + $0x108] sm:$0xff]
      %v302 = vld [vmem:[%s238 + $0x110] sm:$0xff]
      %v303 = vld [vmem:[%s238 + $0x118] sm:$0xff]
      %v304 = vld [vmem:[%s238 + $0x120] sm:$0xff]
      %v305 = vld [vmem:[%s238 + $0x128] sm:$0xff]
      %v306 = vld [vmem:[%s238 + $0x130] sm:$0xff]
      %v307 = vld [vmem:[%s238 + $0x138] sm:$0xff]
      %v308 = vld [vmem:[%s238 + $0x140] sm:$0xff]
      %v309 = vld [vmem:[%s238 + $0x148] sm:$0xff]
      %v310 = vld [vmem:[%s238 + $0x150] sm:$0xff]
      %v311 = vld [vmem:[%s238 + $0x158] sm:$0xff]
      %v312 = vld [vmem:[%s238 + $0x160] sm:$0xff]
      %v313 = vld [vmem:[%s238 + $0x168] sm:$0xff]
      %v314 = vld [vmem:[%s238 + $0x170] sm:$0xff]
      %v315 = vld [vmem:[%s238 + $0x178] sm:$0xff]
      %v316 = vld [vmem:[%s238 + $0x180] sm:$0xff]
      %v317 = vld [vmem:[%s238 + $0x188] sm:$0xff]
      %v318 = vld [vmem:[%s238 + $0x190] sm:$0xff]
      %v319 = vld [vmem:[%s238 + $0x198] sm:$0xff]
      %v320 = vld [vmem:[%s238 + $0x1a0] sm:$0xff]
      %v321 = vld [vmem:[%s238 + $0x1a8] sm:$0xff]
      %v322 = vld [vmem:[%s238 + $0x1b0] sm:$0xff]
      %v323 = vld [vmem:[%s238 + $0x1b8] sm:$0xff]
      %v324 = vld [vmem:[%s238 + $0x1c0] sm:$0xff]
      %v325 = vld [vmem:[%s238 + $0x1c8] sm:$0xff]
      %v326 = vld [vmem:[%s238 + $0x1d0] sm:$0xff]
      %v327 = vld [vmem:[%s238 + $0x1d8] sm:$0xff]
      %v328 = vld [vmem:[%s238 + $0x1e0] sm:$0xff]
      %v329 = vld [vmem:[%s238 + $0x1e8] sm:$0xff]
      %v330 = vld [vmem:[%s238 + $0x1f0] sm:$0xff]
      %v331 = vld [vmem:[%s238 + $0x1f8] sm:$0xff]
      %v332 = vld [vmem:[%s238 + $0x200] sm:$0xff]
      %v333 = vld [vmem:[%s238 + $0x208] sm:$0xff]
      %v334 = vld [vmem:[%s238 + $0x210] sm:$0xff]
      %v335 = vld [vmem:[%s238 + $0x218] sm:$0xff]
      %v336 = vld [vmem:[%s238 + $0x220] sm:$0xff]
      %v337 = vld [vmem:[%s238 + $0x228] sm:$0xff]
      %v338 = vld [vmem:[%s238 + $0x230] sm:$0xff]
      %v339 = vld [vmem:[%s238 + $0x238] sm:$0xff]
      %v340 = vld [vmem:[%s238 + $0x240] sm:$0xff]
      %v341 = vld [vmem:[%s238 + $0x248] sm:$0xff]
      %v342 = vld [vmem:[%s238 + $0x250] sm:$0xff]
      %v343 = vld [vmem:[%s238 + $0x258] sm:$0xff]
      %v344 = vld [vmem:[%s238 + $0x260] sm:$0xff]
      %v345 = vld [vmem:[%s238 + $0x268] sm:$0xff]
      %v346 = vld [vmem:[%s238 + $0x270] sm:$0xff]
      %v347 = vld [vmem:[%s238 + $0x278] sm:$0xff]
      %v348 = vld [vmem:[%s238 + $0x280] sm:$0xff]
      %v349 = vld [vmem:[%s238 + $0x288] sm:$0xff]
      %v350 = vld [vmem:[%s238 + $0x290] sm:$0xff]
      %v351 = vld [vmem:[%s238 + $0x298] sm:$0xff]
      %v352 = vld [vmem:[%s238 + $0x2a0] sm:$0xff]
      %v353 = vld [vmem:[%s238 + $0x2a8] sm:$0xff]
      %v354 = vld [vmem:[%s238 + $0x2b0] sm:$0xff]
      %v355 = vld [vmem:[%s238 + $0x2b8] sm:$0xff]
      %v356 = vld [vmem:[%s238 + $0x2c0] sm:$0xff]
      %v357 = vld [vmem:[%s238 + $0x2c8] sm:$0xff]
      %v358 = vld [vmem:[%s238 + $0x2d0] sm:$0xff]
      %v359 = vld [vmem:[%s238 + $0x2d8] sm:$0xff]
      %v360 = vld [vmem:[%s238 + $0x2e0] sm:$0xff]
      %v361 = vld [vmem:[%s238 + $0x2e8] sm:$0xff]
      %v362 = vld [vmem:[%s238 + $0x2f0] sm:$0xff]
      %v363 = vld [vmem:[%s238 + $0x2f8] sm:$0xff]
      %v364 = vld [vmem:[%s238 + $0x300] sm:$0xff]
      %v365 = vld [vmem:[%s238 + $0x308] sm:$0xff]
      %v366 = vld [vmem:[%s238 + $0x310] sm:$0xff]
      %v367 = vld [vmem:[%s238 + $0x318] sm:$0xff]
      %v368 = vld [vmem:[%s238 + $0x320] sm:$0xff]
      %v369 = vld [vmem:[%s238 + $0x328] sm:$0xff]
      %v370 = vld [vmem:[%s238 + $0x330] sm:$0xff]
      %v371 = vld [vmem:[%s238 + $0x338] sm:$0xff]
      %v372 = vld [vmem:[%s238 + $0x340] sm:$0xff]
      %v373 = vld [vmem:[%s238 + $0x348] sm:$0xff]
      %v374 = vld [vmem:[%s238 + $0x350] sm:$0xff]
      %v375 = vld [vmem:[%s238 + $0x358] sm:$0xff]
      %v376 = vld [vmem:[%s238 + $0x360] sm:$0xff]
      %v377 = vld [vmem:[%s238 + $0x368] sm:$0xff]
      %v378 = vld [vmem:[%s238 + $0x370] sm:$0xff]
      %v379 = vld [vmem:[%s238 + $0x378] sm:$0xff]
      %v380 = vld [vmem:[%s238 + $0x380] sm:$0xff]
      %v381 = vld [vmem:[%s238 + $0x388] sm:$0xff]
      %v382 = vld [vmem:[%s238 + $0x390] sm:$0xff]
      %v383 = vld [vmem:[%s238 + $0x398] sm:$0xff]
      %v384 = vld [vmem:[%s238 + $0x3a0] sm:$0xff]
      %v385 = vld [vmem:[%s238 + $0x3a8] sm:$0xff]
      %v386 = vld [vmem:[%s238 + $0x3b0] sm:$0xff]
      %v387 = vld [vmem:[%s238 + $0x3b8] sm:$0xff]
      %v388 = vld [vmem:[%s238 + $0x3c0] sm:$0xff]
      %v389 = vld [vmem:[%s238 + $0x3c8] sm:$0xff]
      %v390 = vld [vmem:[%s238 + $0x3d0] sm:$0xff]
      %v391 = vld [vmem:[%s238 + $0x3d8] sm:$0xff]
      %v392 = vld [vmem:[%s238 + $0x3e0] sm:$0xff]
      %v393 = vld [vmem:[%s238 + $0x3e8] sm:$0xff]
      %v394 = vld [vmem:[%s238 + $0x3f0] sm:$0xff]
      %v395 = vld [vmem:[%s238 + $0x3f8] sm:$0xff]
      %v396 = vld [vmem:[%s238 + $0x400] sm:$0xff]
      %v397 = vld [vmem:[%s238 + $0x408] sm:$0xff]
      %v398 = vld [vmem:[%s238 + $0x410] sm:$0xff]
      %v399 = vld [vmem:[%s238 + $0x418] sm:$0xff]
      %v400 = vld [vmem:[%s238 + $0x420] sm:$0xff]
      %v401 = vld [vmem:[%s238 + $0x428] sm:$0xff]
      %v402 = vld [vmem:[%s238 + $0x430] sm:$0xff]
      %v403 = vld [vmem:[%s238 + $0x438] sm:$0xff]
      %v404 = vld [vmem:[%s238 + $0x440] sm:$0xff]
      %v405 = vld [vmem:[%s238 + $0x448] sm:$0xff]
      %v406 = vld [vmem:[%s238 + $0x450] sm:$0xff]
      %v407 = vld [vmem:[%s238 + $0x458] sm:$0xff]
      %v408 = vld [vmem:[%s238 + $0x460] sm:$0xff]
      %v409 = vld [vmem:[%s238 + $0x468] sm:$0xff]
      %v410 = vld [vmem:[%s238 + $0x470] sm:$0xff]
      %v411 = vld [vmem:[%s238 + $0x478] sm:$0xff]
      %v412 = vld [vmem:[%s238 + $0x480] sm:$0xff]
      %v413 = vld [vmem:[%s238 + $0x488] sm:$0xff]
      %v414 = vld [vmem:[%s238 + $0x490] sm:$0xff]
      %v415 = vld [vmem:[%s238 + $0x498] sm:$0xff]
      %v416 = vld [vmem:[%s238 + $0x4a0] sm:$0xff]
      %v417 = vld [vmem:[%s238 + $0x4a8] sm:$0xff]
      %v418 = vld [vmem:[%s253] sm:$0xff]
      %v419 = vld [vmem:[%s253 + $0x8] sm:$0xff]
      %v420 = vld [vmem:[%s253 + $0x10] sm:$0xff]
      %v421 = vld [vmem:[%s253 + $0x18] sm:$0xff]
      %v422 = vld [vmem:[%s253 + $0x20] sm:$0xff]
      %v423 = vld [vmem:[%s253 + $0x28] sm:$0xff]
      %v424 = vld [vmem:[%s253 + $0x30] sm:$0xff]
      %v425 = vld [vmem:[%s253 + $0x38] sm:$0xff]
      %v426 = vld [vmem:[%s253 + $0x40] sm:$0xff]
      %v427 = vld [vmem:[%s253 + $0x48] sm:$0xff]
      %v428 = vld [vmem:[%s253 + $0x50] sm:$0xff]
      %v429 = vld [vmem:[%s253 + $0x58] sm:$0xff]
      %v430 = vld [vmem:[%s253 + $0x60] sm:$0xff]
      %v431 = vld [vmem:[%s253 + $0x68] sm:$0xff]
      %v432 = vld [vmem:[%s253 + $0x70] sm:$0xff]
      %v433 = vld [vmem:[%s253 + $0x78] sm:$0xff]
      %v434 = vld [vmem:[%s253 + $0x80] sm:$0xff]
      %v435 = vld [vmem:[%s253 + $0x88] sm:$0xff]
      %v436 = vld [vmem:[%s253 + $0x90] sm:$0xff]
      %v437 = vld [vmem:[%s253 + $0x98] sm:$0xff]
      %v438 = vld [vmem:[%s253 + $0xa0] sm:$0xff]
      %v439 = vld [vmem:[%s253 + $0xa8] sm:$0xff]
      %v440 = vld [vmem:[%s253 + $0xb0] sm:$0xff]
      %v441 = vld [vmem:[%s253 + $0xb8] sm:$0xff]
      %v442 = vld [vmem:[%s253 + $0xc0] sm:$0xff]
      %v443 = vld [vmem:[%s253 + $0xc8] sm:$0xff]
      %v444 = vld [vmem:[%s253 + $0xd0] sm:$0xff]
      %v445 = vld [vmem:[%s253 + $0xd8] sm:$0xff]
      %v446 = vld [vmem:[%s253 + $0xe0] sm:$0xff]
      %v447 = vld [vmem:[%s253 + $0xe8] sm:$0xff]
      %v448 = vld [vmem:[%s253 + $0xf0] sm:$0xff]
      %v449 = vld [vmem:[%s253 + $0xf8] sm:$0xff]
      %v450 = vld [vmem:[%s253 + $0x100] sm:$0xff]
      %v451 = vld [vmem:[%s253 + $0x108] sm:$0xff]
      %v452 = vld [vmem:[%s253 + $0x110] sm:$0xff]
      %v453 = vld [vmem:[%s253 + $0x118] sm:$0xff]
      %v454 = vld [vmem:[%s253 + $0x120] sm:$0xff]
      %v455 = vld [vmem:[%s253 + $0x128] sm:$0xff]
      %v456 = vld [vmem:[%s253 + $0x130] sm:$0xff]
      %v457 = vld [vmem:[%s253 + $0x138] sm:$0xff]
      %v458 = vld [vmem:[%s253 + $0x140] sm:$0xff]
      %v459 = vld [vmem:[%s253 + $0x148] sm:$0xff]
      %v460 = vld [vmem:[%s253 + $0x150] sm:$0xff]
      %v461 = vld [vmem:[%s253 + $0x158] sm:$0xff]
      %v462 = vld [vmem:[%s253 + $0x160] sm:$0xff]
      %v463 = vld [vmem:[%s253 + $0x168] sm:$0xff]
      %v464 = vld [vmem:[%s253 + $0x170] sm:$0xff]
      %v465 = vld [vmem:[%s253 + $0x178] sm:$0xff]
      %v466 = vld [vmem:[%s253 + $0x180] sm:$0xff]
      %v467 = vld [vmem:[%s253 + $0x188] sm:$0xff]
      %v468 = vld [vmem:[%s253 + $0x190] sm:$0xff]
      %v469 = vld [vmem:[%s253 + $0x198] sm:$0xff]
      %v470 = vld [vmem:[%s253 + $0x1a0] sm:$0xff]
      %v471 = vld [vmem:[%s253 + $0x1a8] sm:$0xff]
      %v472 = vld [vmem:[%s253 + $0x1b0] sm:$0xff]
      %v473 = vld [vmem:[%s253 + $0x1b8] sm:$0xff]
      %v474 = vld [vmem:[%s253 + $0x1c0] sm:$0xff]
      %v475 = vld [vmem:[%s253 + $0x1c8] sm:$0xff]
      %v476 = vld [vmem:[%s253 + $0x1d0] sm:$0xff]
      %v477 = vld [vmem:[%s253 + $0x1d8] sm:$0xff]
      %v478 = vld [vmem:[%s253 + $0x1e0] sm:$0xff]
      %v479 = vld [vmem:[%s253 + $0x1e8] sm:$0xff]
      %v480 = vld [vmem:[%s253 + $0x1f0] sm:$0xff]
      %v481 = vld [vmem:[%s253 + $0x1f8] sm:$0xff]
      %v482 = vld [vmem:[%s253 + $0x200] sm:$0xff]
      %v483 = vld [vmem:[%s253 + $0x208] sm:$0xff]
      %v484 = vld [vmem:[%s253 + $0x210] sm:$0xff]
      %v485 = vld [vmem:[%s253 + $0x218] sm:$0xff]
      %v486 = vld [vmem:[%s253 + $0x220] sm:$0xff]
      %v487 = vld [vmem:[%s253 + $0x228] sm:$0xff]
      %v488 = vld [vmem:[%s253 + $0x230] sm:$0xff]
      %v489 = vld [vmem:[%s253 + $0x238] sm:$0xff]
      %v490 = vld [vmem:[%s253 + $0x240] sm:$0xff]
      %v491 = vld [vmem:[%s253 + $0x248] sm:$0xff]
      %v492 = vld [vmem:[%s253 + $0x250] sm:$0xff]
      %v493 = vld [vmem:[%s253 + $0x258] sm:$0xff]
      %v494 = vld [vmem:[%s253 + $0x260] sm:$0xff]
      %v495 = vld [vmem:[%s253 + $0x268] sm:$0xff]
      %v496 = vld [vmem:[%s253 + $0x270] sm:$0xff]
      %v497 = vld [vmem:[%s253 + $0x278] sm:$0xff]
      %v498 = vld [vmem:[%s253 + $0x280] sm:$0xff]
      %v499 = vld [vmem:[%s253 + $0x288] sm:$0xff]
      %v500 = vld [vmem:[%s253 + $0x290] sm:$0xff]
      %v501 = vld [vmem:[%s253 + $0x298] sm:$0xff]
      %v502 = vld [vmem:[%s253 + $0x2a0] sm:$0xff]
      %v503 = vld [vmem:[%s253 + $0x2a8] sm:$0xff]
      %v504 = vld [vmem:[%s253 + $0x2b0] sm:$0xff]
      %v505 = vld [vmem:[%s253 + $0x2b8] sm:$0xff]
      %v506 = vld [vmem:[%s253 + $0x2c0] sm:$0xff]
      %v507 = vld [vmem:[%s253 + $0x2c8] sm:$0xff]
      %v508 = vld [vmem:[%s253 + $0x2d0] sm:$0xff]
      %v509 = vld [vmem:[%s253 + $0x2d8] sm:$0xff]
      %v510 = vld [vmem:[%s253 + $0x2e0] sm:$0xff]
      %v511 = vld [vmem:[%s253 + $0x2e8] sm:$0xff]
      %v512 = vld [vmem:[%s253 + $0x2f0] sm:$0xff]
      %v513 = vld [vmem:[%s253 + $0x2f8] sm:$0xff]
      %v514 = vld [vmem:[%s253 + $0x300] sm:$0xff]
      %v515 = vld [vmem:[%s253 + $0x308] sm:$0xff]
      %v516 = vld [vmem:[%s253 + $0x310] sm:$0xff]
      %v517 = vld [vmem:[%s253 + $0x318] sm:$0xff]
      %v518 = vld [vmem:[%s253 + $0x320] sm:$0xff]
      %v519 = vld [vmem:[%s253 + $0x328] sm:$0xff]
      %v520 = vld [vmem:[%s253 + $0x330] sm:$0xff]
      %v521 = vld [vmem:[%s253 + $0x338] sm:$0xff]
      %v522 = vld [vmem:[%s253 + $0x340] sm:$0xff]
      %v523 = vld [vmem:[%s253 + $0x348] sm:$0xff]
      %v524 = vld [vmem:[%s253 + $0x350] sm:$0xff]
      %v525 = vld [vmem:[%s253 + $0x358] sm:$0xff]
      %v526 = vld [vmem:[%s253 + $0x360] sm:$0xff]
      %v527 = vld [vmem:[%s253 + $0x368] sm:$0xff]
      %v528 = vld [vmem:[%s253 + $0x370] sm:$0xff]
      %v529 = vld [vmem:[%s253 + $0x378] sm:$0xff]
      %v530 = vld [vmem:[%s253 + $0x380] sm:$0xff]
      %v531 = vld [vmem:[%s253 + $0x388] sm:$0xff]
      %v532 = vld [vmem:[%s253 + $0x390] sm:$0xff]
      %v533 = vld [vmem:[%s253 + $0x398] sm:$0xff]
      %v534 = vld [vmem:[%s253 + $0x3a0] sm:$0xff]
      %v535 = vld [vmem:[%s253 + $0x3a8] sm:$0xff]
      %v536 = vld [vmem:[%s253 + $0x3b0] sm:$0xff]
      %v537 = vld [vmem:[%s253 + $0x3b8] sm:$0xff]
      %v538 = vld [vmem:[%s253 + $0x3c0] sm:$0xff]
      %v539 = vld [vmem:[%s253 + $0x3c8] sm:$0xff]
      %v540 = vld [vmem:[%s253 + $0x3d0] sm:$0xff]
      %v541 = vld [vmem:[%s253 + $0x3d8] sm:$0xff]
      %v542 = vld [vmem:[%s253 + $0x3e0] sm:$0xff]
      %v543 = vld [vmem:[%s253 + $0x3e8] sm:$0xff]
      %v544 = vld [vmem:[%s253 + $0x3f0] sm:$0xff]
      %v545 = vld [vmem:[%s253 + $0x3f8] sm:$0xff]
      %v546 = vld [vmem:[%s253 + $0x400] sm:$0xff]
      %v547 = vld [vmem:[%s253 + $0x408] sm:$0xff]
      %v548 = vld [vmem:[%s253 + $0x410] sm:$0xff]
      %v549 = vld [vmem:[%s253 + $0x418] sm:$0xff]
      %v550 = vld [vmem:[%s253 + $0x420] sm:$0xff]
      %v551 = vld [vmem:[%s253 + $0x428] sm:$0xff]
      %v552 = vld [vmem:[%s253 + $0x430] sm:$0xff]
      %v553 = vld [vmem:[%s253 + $0x438] sm:$0xff]
      %v554 = vld [vmem:[%s253 + $0x440] sm:$0xff]
      %v555 = vld [vmem:[%s253 + $0x448] sm:$0xff]
      %v556 = vld [vmem:[%s253 + $0x450] sm:$0xff]
      %v557 = vld [vmem:[%s253 + $0x458] sm:$0xff]
      %v558 = vld [vmem:[%s253 + $0x460] sm:$0xff]
      %v559 = vld [vmem:[%s253 + $0x468] sm:$0xff]
      %v560 = vld [vmem:[%s253 + $0x470] sm:$0xff]
      %v561 = vld [vmem:[%s253 + $0x478] sm:$0xff]
      %v562 = vld [vmem:[%s253 + $0x480] sm:$0xff]
      %v563 = vld [vmem:[%s253 + $0x488] sm:$0xff]
      %v564 = vld [vmem:[%s253 + $0x490] sm:$0xff]
      %v565 = vld [vmem:[%s253 + $0x498] sm:$0xff]
      %v566 = vld [vmem:[%s253 + $0x4a0] sm:$0xff]
      %v567 = vld [vmem:[%s253 + $0x4a8] sm:$0xff]
      %v568 = vld [vmem:[%s253 + $0x4b0] sm:$0xff]
      %v569 = vld [vmem:[%s253 + $0x4b8] sm:$0xff]
      %v570 = vld [vmem:[%s253 + $0x4c0] sm:$0xff]
      %v571 = vld [vmem:[%s253 + $0x4c8] sm:$0xff]
      %v572 = vld [vmem:[%s253 + $0x4d0] sm:$0xff]
      %v573 = vld [vmem:[%s253 + $0x4d8] sm:$0xff]
      %v574 = vld [vmem:[%s253 + $0x4e0] sm:$0xff]
      %v575 = vld [vmem:[%s253 + $0x4e8] sm:$0xff]
      %v576 = vld [vmem:[%s253 + $0x4f0] sm:$0xff]
      %v577 = vld [vmem:[%s253 + $0x4f8] sm:$0xff]
      %v578 = vld [vmem:[%s253 + $0x500] sm:$0xff]
      %v579 = vld [vmem:[%s253 + $0x508] sm:$0xff]
      %v580 = vld [vmem:[%s253 + $0x510] sm:$0xff]
      %v581 = vld [vmem:[%s253 + $0x518] sm:$0xff]
      %v582 = vld [vmem:[%s253 + $0x520] sm:$0xff]
      %v583 = vld [vmem:[%s253 + $0x528] sm:$0xff]
      %v584 = vld [vmem:[%s253 + $0x530] sm:$0xff]
      %v585 = vld [vmem:[%s253 + $0x538] sm:$0xff]
      %v586 = vld [vmem:[%s253 + $0x540] sm:$0xff]
      %v587 = vld [vmem:[%s253 + $0x548] sm:$0xff]
      %v588 = vld [vmem:[%s253 + $0x550] sm:$0xff]
      %v589 = vld [vmem:[%s253 + $0x558] sm:$0xff]
      %v590 = vld [vmem:[%s253 + $0x560] sm:$0xff]
      %v591 = vld [vmem:[%s253 + $0x568] sm:$0xff]
      %v592 = vld [vmem:[%s253 + $0x570] sm:$0xff]
      %v593 = vld [vmem:[%s253 + $0x578] sm:$0xff]
      %v594 = vld [vmem:[%s253 + $0x580] sm:$0xff]
      %v595 = vld [vmem:[%s253 + $0x588] sm:$0xff]
      %v596 = vld [vmem:[%s253 + $0x590] sm:$0xff]
      %v597 = vld [vmem:[%s253 + $0x598] sm:$0xff]
      %v598 = vld [vmem:[%s253 + $0x5a0] sm:$0xff]
      %v599 = vld [vmem:[%s253 + $0x5a8] sm:$0xff]
      %v600 = vld [vmem:[%s253 + $0x5b0] sm:$0xff]
      %v601 = vld [vmem:[%s253 + $0x5b8] sm:$0xff]
      %v602 = vld [vmem:[%s253 + $0x5c0] sm:$0xff]
      %v603 = vld [vmem:[%s253 + $0x5c8] sm:$0xff]
      %v604 = vld [vmem:[%s253 + $0x5d0] sm:$0xff]
      %v605 = vld [vmem:[%s253 + $0x5d8] sm:$0xff]
      %v606 = vld [vmem:[%s253 + $0x5e0] sm:$0xff]
      %v607 = vld [vmem:[%s253 + $0x5e8] sm:$0xff]
      %v608 = vld [vmem:[%s253 + $0x5f0] sm:$0xff]
      %v609 = vld [vmem:[%s253 + $0x5f8] sm:$0xff]
      %v610 = vld [vmem:[%s253 + $0x600] sm:$0xff]
      %v611 = vld [vmem:[%s253 + $0x608] sm:$0xff]
      %v612 = vld [vmem:[%s253 + $0x610] sm:$0xff]
      %v613 = vld [vmem:[%s253 + $0x618] sm:$0xff]
      %v614 = vld [vmem:[%s253 + $0x620] sm:$0xff]
      %v615 = vld [vmem:[%s253 + $0x628] sm:$0xff]
      %v616 = vld [vmem:[%s253 + $0x630] sm:$0xff]
      %v617 = vld [vmem:[%s253 + $0x638] sm:$0xff]
      %v618 = vld [vmem:[%s253 + $0x640] sm:$0xff]
      %v619 = vld [vmem:[%s253 + $0x648] sm:$0xff]
      %v620 = vld [vmem:[%s253 + $0x650] sm:$0xff]
      %v621 = vld [vmem:[%s253 + $0x658] sm:$0xff]
      %v622 = vld [vmem:[%s253 + $0x660] sm:$0xff]
      %v623 = vld [vmem:[%s253 + $0x668] sm:$0xff]
      %v624 = vld [vmem:[%s253 + $0x670] sm:$0xff]
      %v625 = vld [vmem:[%s253 + $0x678] sm:$0xff]
      %v626 = vld [vmem:[%s253 + $0x680] sm:$0xff]
      %v627 = vld [vmem:[%s253 + $0x688] sm:$0xff]
      %v628 = vld [vmem:[%s253 + $0x690] sm:$0xff]
      %v629 = vld [vmem:[%s253 + $0x698] sm:$0xff]
      %v630 = vld [vmem:[%s253 + $0x6a0] sm:$0xff]
      %v631 = vld [vmem:[%s253 + $0x6a8] sm:$0xff]
      %v632 = vld [vmem:[%s253 + $0x6b0] sm:$0xff]
      %v633 = vld [vmem:[%s253 + $0x6b8] sm:$0xff]
      %v634 = vld [vmem:[%s253 + $0x6c0] sm:$0xff]
      %v635 = vld [vmem:[%s253 + $0x6c8] sm:$0xff]
      %v636 = vld [vmem:[%s253 + $0x6d0] sm:$0xff]
      %v637 = vld [vmem:[%s253 + $0x6d8] sm:$0xff]
      %v638 = vld [vmem:[%s253 + $0x6e0] sm:$0xff]
      %v639 = vld [vmem:[%s253 + $0x6e8] sm:$0xff]
      %v640 = vld [vmem:[%s253 + $0x6f0] sm:$0xff]
      %v641 = vld [vmem:[%s253 + $0x6f8] sm:$0xff]
      %v642 = vld [vmem:[%s253 + $0x700] sm:$0xff]
      %v643 = vld [vmem:[%s253 + $0x708] sm:$0xff]
      %v644 = vld [vmem:[%s253 + $0x710] sm:$0xff]
      %v645 = vld [vmem:[%s253 + $0x718] sm:$0xff]
      %v646 = vld [vmem:[%s253 + $0x720] sm:$0xff]
      %v647 = vld [vmem:[%s253 + $0x728] sm:$0xff]
      %v648 = vld [vmem:[%s253 + $0x730] sm:$0xff]
      %v649 = vld [vmem:[%s253 + $0x738] sm:$0xff]
      %v650 = vld [vmem:[%s253 + $0x740] sm:$0xff]
      %v651 = vld [vmem:[%s253 + $0x748] sm:$0xff]
      %v652 = vld [vmem:[%s253 + $0x750] sm:$0xff]
      %v653 = vld [vmem:[%s253 + $0x758] sm:$0xff]
      %v654 = vld [vmem:[%s253 + $0x760] sm:$0xff]
      %v655 = vld [vmem:[%s253 + $0x768] sm:$0xff]
      %v656 = vld [vmem:[%s253 + $0x770] sm:$0xff]
      %v657 = vld [vmem:[%s253 + $0x778] sm:$0xff]
      %v658 = vld [vmem:[%s253 + $0x780] sm:$0xff]
      %v659 = vld [vmem:[%s253 + $0x788] sm:$0xff]
      %v660 = vld [vmem:[%s253 + $0x790] sm:$0xff]
      %v661 = vld [vmem:[%s253 + $0x798] sm:$0xff]
      %v662 = vld [vmem:[%s253 + $0x7a0] sm:$0xff]
      %v663 = vld [vmem:[%s253 + $0x7a8] sm:$0xff]
      %v664 = vld [vmem:[%s253 + $0x7b0] sm:$0xff]
      %v665 = vld [vmem:[%s253 + $0x7b8] sm:$0xff]
      %v666 = vld [vmem:[%s253 + $0x7c0] sm:$0xff]
      %v667 = vld [vmem:[%s253 + $0x7c8] sm:$0xff]
      %v668 = vld [vmem:[%s253 + $0x7d0] sm:$0xff]
      %v669 = vld [vmem:[%s253 + $0x7d8] sm:$0xff]
      %v670 = vld [vmem:[%s253 + $0x7e0] sm:$0xff]
      %v671 = vld [vmem:[%s253 + $0x7e8] sm:$0xff]
      %v672 = vld [vmem:[%s253 + $0x7f0] sm:$0xff]
      %v673 = vld [vmem:[%s253 + $0x7f8] sm:$0xff]
      %v674 = vld [vmem:[%s253 + $0x800] sm:$0xff]
      %v675 = vld [vmem:[%s253 + $0x808] sm:$0xff]
      %v676 = vld [vmem:[%s253 + $0x810] sm:$0xff]
      %v677 = vld [vmem:[%s253 + $0x818] sm:$0xff]
      %v678 = vld [vmem:[%s253 + $0x820] sm:$0xff]
      %v679 = vld [vmem:[%s253 + $0x828] sm:$0xff]
      %v680 = vld [vmem:[%s253 + $0x830] sm:$0xff]
      %v681 = vld [vmem:[%s253 + $0x838] sm:$0xff]
      %v682 = vld [vmem:[%s253 + $0x840] sm:$0xff]
      %v683 = vld [vmem:[%s253 + $0x848] sm:$0xff]
      %v684 = vld [vmem:[%s253 + $0x850] sm:$0xff]
      %v685 = vld [vmem:[%s253 + $0x858] sm:$0xff]
      %v686 = vld [vmem:[%s253 + $0x860] sm:$0xff]
      %v687 = vld [vmem:[%s253 + $0x868] sm:$0xff]
      %v688 = vld [vmem:[%s253 + $0x870] sm:$0xff]
      %v689 = vld [vmem:[%s253 + $0x878] sm:$0xff]
      %v690 = vld [vmem:[%s253 + $0x880] sm:$0xff]
      %v691 = vld [vmem:[%s253 + $0x888] sm:$0xff]
      %v692 = vld [vmem:[%s253 + $0x890] sm:$0xff]
      %v693 = vld [vmem:[%s253 + $0x898] sm:$0xff]
      %v694 = vld [vmem:[%s253 + $0x8a0] sm:$0xff]
      %v695 = vld [vmem:[%s253 + $0x8a8] sm:$0xff]
      %v696 = vld [vmem:[%s253 + $0x8b0] sm:$0xff]
      %v697 = vld [vmem:[%s253 + $0x8b8] sm:$0xff]
      %v698 = vld [vmem:[%s253 + $0x8c0] sm:$0xff]
      %v699 = vld [vmem:[%s253 + $0x8c8] sm:$0xff]
      %v700 = vld [vmem:[%s253 + $0x8d0] sm:$0xff]
      %v701 = vld [vmem:[%s253 + $0x8d8] sm:$0xff]
      %v702 = vld [vmem:[%s253 + $0x8e0] sm:$0xff]
      %v703 = vld [vmem:[%s253 + $0x8e8] sm:$0xff]
      %v704 = vld [vmem:[%s253 + $0x8f0] sm:$0xff]
      %v705 = vld [vmem:[%s253 + $0x8f8] sm:$0xff]
      %v706 = vld [vmem:[%s253 + $0x900] sm:$0xff]
      %v707 = vld [vmem:[%s253 + $0x908] sm:$0xff]
      %v708 = vld [vmem:[%s253 + $0x910] sm:$0xff]
      %v709 = vld [vmem:[%s253 + $0x918] sm:$0xff]
      %v710 = vld [vmem:[%s253 + $0x920] sm:$0xff]
      %v711 = vld [vmem:[%s253 + $0x928] sm:$0xff]
      %v712 = vld [vmem:[%s253 + $0x930] sm:$0xff]
      %v713 = vld [vmem:[%s253 + $0x938] sm:$0xff]
      %v714 = vld [vmem:[%s253 + $0x940] sm:$0xff]
      %v715 = vld [vmem:[%s253 + $0x948] sm:$0xff]
      %v716 = vld [vmem:[%s253 + $0x950] sm:$0xff]
      %v717 = vld [vmem:[%s253 + $0x958] sm:$0xff]
      %v718 = vld [vmem:[%s253 + $0x960] sm:$0xff]
      %v719 = vld [vmem:[%s253 + $0x968] sm:$0xff]
      %v720 = vld [vmem:[%s253 + $0x970] sm:$0xff]
      %v721 = vld [vmem:[%s253 + $0x978] sm:$0xff]
      %v722 = vld [vmem:[%s253 + $0x980] sm:$0xff]
      %v723 = vld [vmem:[%s253 + $0x988] sm:$0xff]
      %v724 = vld [vmem:[%s253 + $0x990] sm:$0xff]
      %v725 = vld [vmem:[%s253 + $0x998] sm:$0xff]
      %v726 = vld [vmem:[%s253 + $0x9a0] sm:$0xff]
      %v727 = vld [vmem:[%s253 + $0x9a8] sm:$0xff]
      %v728 = vld [vmem:[%s253 + $0x9b0] sm:$0xff]
      %v729 = vld [vmem:[%s253 + $0x9b8] sm:$0xff]
      %v730 = vld [vmem:[%s253 + $0x9c0] sm:$0xff]
      %v731 = vld [vmem:[%s253 + $0x9c8] sm:$0xff]
      %v732 = vld [vmem:[%s253 + $0x9d0] sm:$0xff]
      %v733 = vld [vmem:[%s253 + $0x9d8] sm:$0xff]
      %v734 = vld [vmem:[%s253 + $0x9e0] sm:$0xff]
      %v735 = vld [vmem:[%s253 + $0x9e8] sm:$0xff]
      %v736 = vld [vmem:[%s253 + $0x9f0] sm:$0xff]
      %v737 = vld [vmem:[%s253 + $0x9f8] sm:$0xff]
      %v738 = vld [vmem:[%s253 + $0xa00] sm:$0xff]
      %v739 = vld [vmem:[%s253 + $0xa08] sm:$0xff]
      %v740 = vld [vmem:[%s253 + $0xa10] sm:$0xff]
      %v741 = vld [vmem:[%s253 + $0xa18] sm:$0xff]
      %v742 = vld [vmem:[%s253 + $0xa20] sm:$0xff]
      %v743 = vld [vmem:[%s253 + $0xa28] sm:$0xff]
      %v744 = vld [vmem:[%s253 + $0xa30] sm:$0xff]
      %v745 = vld [vmem:[%s253 + $0xa38] sm:$0xff]
      %v746 = vld [vmem:[%s253 + $0xa40] sm:$0xff]
      %v747 = vld [vmem:[%s253 + $0xa48] sm:$0xff]
      %v748 = vld [vmem:[%s253 + $0xa50] sm:$0xff]
      %v749 = vld [vmem:[%s253 + $0xa58] sm:$0xff]
      %v750 = vld [vmem:[%s253 + $0xa60] sm:$0xff]
      %v751 = vld [vmem:[%s253 + $0xa68] sm:$0xff]
      %v752 = vld [vmem:[%s253 + $0xa70] sm:$0xff]
      %v753 = vld [vmem:[%s253 + $0xa78] sm:$0xff]
      %v754 = vld [vmem:[%s253 + $0xa80] sm:$0xff]
      %v755 = vld [vmem:[%s253 + $0xa88] sm:$0xff]
      %v756 = vld [vmem:[%s253 + $0xa90] sm:$0xff]
      %v757 = vld [vmem:[%s253 + $0xa98] sm:$0xff]
      %v758 = vld [vmem:[%s253 + $0xaa0] sm:$0xff]
      %v759 = vld [vmem:[%s253 + $0xaa8] sm:$0xff]
      %v760 = vld [vmem:[%s253 + $0xab0] sm:$0xff]
      %v761 = vld [vmem:[%s253 + $0xab8] sm:$0xff]
      %v762 = vld [vmem:[%s253 + $0xac0] sm:$0xff]
      %v763 = vld [vmem:[%s253 + $0xac8] sm:$0xff]
      %v764 = vld [vmem:[%s253 + $0xad0] sm:$0xff]
      %v765 = vld [vmem:[%s253 + $0xad8] sm:$0xff]
      %v766 = vld [vmem:[%s253 + $0xae0] sm:$0xff]
      %v767 = vld [vmem:[%s253 + $0xae8] sm:$0xff]
      %v768 = vld [vmem:[%s253 + $0xaf0] sm:$0xff]
      %v769 = vld [vmem:[%s253 + $0xaf8] sm:$0xff]
      %v770 = vld [vmem:[%s253 + $0xb00] sm:$0xff]
      %v771 = vld [vmem:[%s253 + $0xb08] sm:$0xff]
      %v772 = vld [vmem:[%s253 + $0xb10] sm:$0xff]
      %v773 = vld [vmem:[%s253 + $0xb18] sm:$0xff]
      %v774 = vld [vmem:[%s253 + $0xb20] sm:$0xff]
      %v775 = vld [vmem:[%s253 + $0xb28] sm:$0xff]
      %v776 = vld [vmem:[%s253 + $0xb30] sm:$0xff]
      %v777 = vld [vmem:[%s253 + $0xb38] sm:$0xff]
      %v778 = vld [vmem:[%s253 + $0xb40] sm:$0xff]
      %v779 = vld [vmem:[%s253 + $0xb48] sm:$0xff]
      %v780 = vld [vmem:[%s253 + $0xb50] sm:$0xff]
      %v781 = vld [vmem:[%s253 + $0xb58] sm:$0xff]
      %v782 = vld [vmem:[%s253 + $0xb60] sm:$0xff]
      %v783 = vld [vmem:[%s253 + $0xb68] sm:$0xff]
      %v784 = vld [vmem:[%s253 + $0xb70] sm:$0xff]
      %v785 = vld [vmem:[%s253 + $0xb78] sm:$0xff]
      %v786 = vld [vmem:[%s253 + $0xb80] sm:$0xff]
      %v787 = vld [vmem:[%s253 + $0xb88] sm:$0xff]
      %v788 = vld [vmem:[%s253 + $0xb90] sm:$0xff]
      %v789 = vld [vmem:[%s253 + $0xb98] sm:$0xff]
      %v790 = vld [vmem:[%s253 + $0xba0] sm:$0xff]
      %v791 = vld [vmem:[%s253 + $0xba8] sm:$0xff]
      %v792 = vld [vmem:[%s253 + $0xbb0] sm:$0xff]
      %v793 = vld [vmem:[%s253 + $0xbb8] sm:$0xff]
      %v794 = vld [vmem:[%s253 + $0xbc0] sm:$0xff]
      %v795 = vld [vmem:[%s253 + $0xbc8] sm:$0xff]
      %v796 = vld [vmem:[%s253 + $0xbd0] sm:$0xff]
      %v797 = vld [vmem:[%s253 + $0xbd8] sm:$0xff]
      %v798 = vld [vmem:[%s253 + $0xbe0] sm:$0xff]
      %v799 = vld [vmem:[%s253 + $0xbe8] sm:$0xff]
      %v800 = vld [vmem:[%s253 + $0xbf0] sm:$0xff]
      %v801 = vld [vmem:[%s253 + $0xbf8] sm:$0xff]
      %v802 = vld [vmem:[%s253 + $0xc00] sm:$0xff]
      %v803 = vld [vmem:[%s253 + $0xc08] sm:$0xff]
      %v804 = vld [vmem:[%s253 + $0xc10] sm:$0xff]
      %v805 = vld [vmem:[%s253 + $0xc18] sm:$0xff]
      %v806 = vld [vmem:[%s253 + $0xc20] sm:$0xff]
      %v807 = vld [vmem:[%s253 + $0xc28] sm:$0xff]
      %v808 = vld [vmem:[%s253 + $0xc30] sm:$0xff]
      %v809 = vld [vmem:[%s253 + $0xc38] sm:$0xff]
      %v810 = vld [vmem:[%s253 + $0xc40] sm:$0xff]
      %v811 = vld [vmem:[%s253 + $0xc48] sm:$0xff]
      %v812 = vld [vmem:[%s253 + $0xc50] sm:$0xff]
      %v813 = vld [vmem:[%s253 + $0xc58] sm:$0xff]
      %v814 = vld [vmem:[%s253 + $0xc60] sm:$0xff]
      %v815 = vld [vmem:[%s253 + $0xc68] sm:$0xff]
      %v816 = vld [vmem:[%s253 + $0xc70] sm:$0xff]
      %v817 = vld [vmem:[%s253 + $0xc78] sm:$0xff]
      %v818 = vld [vmem:[%s253 + $0xc80] sm:$0xff]
      %v819 = vld [vmem:[%s253 + $0xc88] sm:$0xff]
      %v820 = vld [vmem:[%s253 + $0xc90] sm:$0xff]
      %v821 = vld [vmem:[%s253 + $0xc98] sm:$0xff]
      %v822 = vld [vmem:[%s253 + $0xca0] sm:$0xff]
      %v823 = vld [vmem:[%s253 + $0xca8] sm:$0xff]
      %v824 = vld [vmem:[%s253 + $0xcb0] sm:$0xff]
      %v825 = vld [vmem:[%s253 + $0xcb8] sm:$0xff]
      %v826 = vld [vmem:[%s253 + $0xcc0] sm:$0xff]
      %v827 = vld [vmem:[%s253 + $0xcc8] sm:$0xff]
      %v828 = vld [vmem:[%s253 + $0xcd0] sm:$0xff]
      %v829 = vld [vmem:[%s253 + $0xcd8] sm:$0xff]
      %v830 = vld [vmem:[%s253 + $0xce0] sm:$0xff]
      %v831 = vld [vmem:[%s253 + $0xce8] sm:$0xff]
      %v832 = vld [vmem:[%s253 + $0xcf0] sm:$0xff]
      %v833 = vld [vmem:[%s253 + $0xcf8] sm:$0xff]
      %v834 = vld [vmem:[%s253 + $0xd00] sm:$0xff]
      %v835 = vld [vmem:[%s253 + $0xd08] sm:$0xff]
      %v836 = vld [vmem:[%s253 + $0xd10] sm:$0xff]
      %v837 = vld [vmem:[%s253 + $0xd18] sm:$0xff]
      %v838 = vld [vmem:[%s253 + $0xd20] sm:$0xff]
      %v839 = vld [vmem:[%s253 + $0xd28] sm:$0xff]
      %v840 = vld [vmem:[%s253 + $0xd30] sm:$0xff]
      %v841 = vld [vmem:[%s253 + $0xd38] sm:$0xff]
      %v842 = vld [vmem:[%s253 + $0xd40] sm:$0xff]
      %v843 = vld [vmem:[%s253 + $0xd48] sm:$0xff]
      %v844 = vld [vmem:[%s253 + $0xd50] sm:$0xff]
      %v845 = vld [vmem:[%s253 + $0xd58] sm:$0xff]
      %v846 = vld [vmem:[%s253 + $0xd60] sm:$0xff]
      %v847 = vld [vmem:[%s253 + $0xd68] sm:$0xff]
      %v848 = vld [vmem:[%s253 + $0xd70] sm:$0xff]
      %v849 = vld [vmem:[%s253 + $0xd78] sm:$0xff]
      %v850 = vld [vmem:[%s253 + $0xd80] sm:$0xff]
      %v851 = vld [vmem:[%s253 + $0xd88] sm:$0xff]
      %v852 = vld [vmem:[%s253 + $0xd90] sm:$0xff]
      %v853 = vld [vmem:[%s253 + $0xd98] sm:$0xff]
      %v854 = vld [vmem:[%s253 + $0xda0] sm:$0xff]
      %v855 = vld [vmem:[%s253 + $0xda8] sm:$0xff]
      %v856 = vld [vmem:[%s253 + $0xdb0] sm:$0xff]
      %v857 = vld [vmem:[%s253 + $0xdb8] sm:$0xff]
      %v858 = vld [vmem:[%s253 + $0xdc0] sm:$0xff]
      %v859 = vld [vmem:[%s253 + $0xdc8] sm:$0xff]
      %v860 = vld [vmem:[%s253 + $0xdd0] sm:$0xff]
      %v861 = vld [vmem:[%s253 + $0xdd8] sm:$0xff]
      %v862 = vld [vmem:[%s253 + $0xde0] sm:$0xff]
      %v863 = vld [vmem:[%s253 + $0xde8] sm:$0xff]
      %v864 = vld [vmem:[%s253 + $0xdf0] sm:$0xff]
      %v865 = vld [vmem:[%s253 + $0xdf8] sm:$0xff]
      %v866 = vld [vmem:[%s253 + $0xe00] sm:$0xff]
      %v867 = vld [vmem:[%s253 + $0xe08] sm:$0xff]
      %v868 = vld [vmem:[%s253 + $0xe10] sm:$0xff]
      %v869 = vld [vmem:[%s253 + $0xe18] sm:$0xff]
      %v870 = vld [vmem:[%s253 + $0xe20] sm:$0xff]
      %v871 = vld [vmem:[%s253 + $0xe28] sm:$0xff]
      %v872 = vld [vmem:[%s253 + $0xe30] sm:$0xff]
      %v873 = vld [vmem:[%s253 + $0xe38] sm:$0xff]
      %v874 = vld [vmem:[%s253 + $0xe40] sm:$0xff]
      %v875 = vld [vmem:[%s253 + $0xe48] sm:$0xff]
      %v876 = vld [vmem:[%s253 + $0xe50] sm:$0xff]
      %v877 = vld [vmem:[%s253 + $0xe58] sm:$0xff]
      %v878 = vld [vmem:[%s253 + $0xe60] sm:$0xff]
      %v879 = vld [vmem:[%s253 + $0xe68] sm:$0xff]
      %v880 = vld [vmem:[%s253 + $0xe70] sm:$0xff]
      %v881 = vld [vmem:[%s253 + $0xe78] sm:$0xff]
      %v882 = vld [vmem:[%s253 + $0xe80] sm:$0xff]
      %v883 = vld [vmem:[%s253 + $0xe88] sm:$0xff]
      %v884 = vld [vmem:[%s253 + $0xe90] sm:$0xff]
      %v885 = vld [vmem:[%s253 + $0xe98] sm:$0xff]
      %v886 = vld [vmem:[%s253 + $0xea0] sm:$0xff]
      %v887 = vld [vmem:[%s253 + $0xea8] sm:$0xff]
      %v888 = vld [vmem:[%s253 + $0xeb0] sm:$0xff]
      %v889 = vld [vmem:[%s253 + $0xeb8] sm:$0xff]
      %v890 = vld [vmem:[%s253 + $0xec0] sm:$0xff]
      %v891 = vld [vmem:[%s253 + $0xec8] sm:$0xff]
      %v892 = vld [vmem:[%s253 + $0xed0] sm:$0xff]
      %v893 = vld [vmem:[%s253 + $0xed8] sm:$0xff]
      %v894 = vld [vmem:[%s253 + $0xee0] sm:$0xff]
      %v895 = vld [vmem:[%s253 + $0xee8] sm:$0xff]
      %v896 = vld [vmem:[%s253 + $0xef0] sm:$0xff]
      %v897 = vld [vmem:[%s253 + $0xef8] sm:$0xff]
      %v898 = vpack.c.bf16 %v419, %v418
      %v899 = vpack.c.bf16 %v421, %v420
      %v900 = vpack.c.bf16 %v423, %v422
      %v901 = vpack.c.bf16 %v425, %v424
      %v902 = vpack.c.bf16 %v427, %v426
      %v903 = vpack.c.bf16 %v429, %v428
      %v904 = vpack.c.bf16 %v431, %v430
      %v905 = vpack.c.bf16 %v433, %v432
      %v906 = vpack.c.bf16 %v435, %v434
      %v907 = vpack.c.bf16 %v437, %v436
      %v908 = vpack.c.bf16 %v439, %v438
      %v909 = vpack.c.bf16 %v441, %v440
      %v910 = vpack.c.bf16 %v443, %v442
      %v911 = vpack.c.bf16 %v445, %v444
      %v912 = vpack.c.bf16 %v447, %v446
      %v913 = vpack.c.bf16 %v449, %v448
      %v914 = vpack.c.bf16 %v451, %v450
      %v915 = vpack.c.bf16 %v453, %v452
      %v916 = vpack.c.bf16 %v455, %v454
      %v917 = vpack.c.bf16 %v457, %v456
      %v918 = vpack.c.bf16 %v459, %v458
      %v919 = vpack.c.bf16 %v461, %v460
      %v920 = vpack.c.bf16 %v463, %v462
      %v921 = vpack.c.bf16 %v465, %v464
      %v922 = vpack.c.bf16 %v467, %v466
      %v923 = vpack.c.bf16 %v469, %v468
      %v924 = vpack.c.bf16 %v471, %v470
      %v925 = vpack.c.bf16 %v473, %v472
      %v926 = vpack.c.bf16 %v475, %v474
      %v927 = vpack.c.bf16 %v477, %v476
      %v928 = vpack.c.bf16 %v479, %v478
      %v929 = vpack.c.bf16 %v481, %v480
      %v930 = vpack.c.bf16 %v483, %v482
      %v931 = vpack.c.bf16 %v485, %v484
      %v932 = vpack.c.bf16 %v487, %v486
      %v933 = vpack.c.bf16 %v489, %v488
      %v934 = vpack.c.bf16 %v491, %v490
      %v935 = vpack.c.bf16 %v493, %v492
      %v936 = vpack.c.bf16 %v495, %v494
      %v937 = vpack.c.bf16 %v497, %v496
      %v938 = vpack.c.bf16 %v499, %v498
      %v939 = vpack.c.bf16 %v501, %v500
      %v940 = vpack.c.bf16 %v503, %v502
      %v941 = vpack.c.bf16 %v505, %v504
      %v942 = vpack.c.bf16 %v507, %v506
      %v943 = vpack.c.bf16 %v509, %v508
      %v944 = vpack.c.bf16 %v511, %v510
      %v945 = vpack.c.bf16 %v513, %v512
      %v946 = vpack.c.bf16 %v515, %v514
      %v947 = vpack.c.bf16 %v517, %v516
      %v948 = vpack.c.bf16 %v519, %v518
      %v949 = vpack.c.bf16 %v521, %v520
      %v950 = vpack.c.bf16 %v523, %v522
      %v951 = vpack.c.bf16 %v525, %v524
      %v952 = vpack.c.bf16 %v527, %v526
      %v953 = vpack.c.bf16 %v529, %v528
      %v954 = vpack.c.bf16 %v531, %v530
      %v955 = vpack.c.bf16 %v533, %v532
      %v956 = vpack.c.bf16 %v535, %v534
      %v957 = vpack.c.bf16 %v537, %v536
      %v958 = vpack.c.bf16 %v539, %v538
      %v959 = vpack.c.bf16 %v541, %v540
      %v960 = vpack.c.bf16 %v543, %v542
      %v961 = vpack.c.bf16 %v545, %v544
      %v962 = vpack.c.bf16 %v547, %v546
      %v963 = vpack.c.bf16 %v549, %v548
      %v964 = vpack.c.bf16 %v551, %v550
      %v965 = vpack.c.bf16 %v553, %v552
      %v966 = vpack.c.bf16 %v555, %v554
      %v967 = vpack.c.bf16 %v557, %v556
      %v968 = vpack.c.bf16 %v559, %v558
      %v969 = vpack.c.bf16 %v561, %v560
      %v970 = vpack.c.bf16 %v563, %v562
      %v971 = vpack.c.bf16 %v565, %v564
      %v972 = vpack.c.bf16 %v567, %v566
      %v973 = vpack.c.bf16 %v569, %v568
      %v974 = vpack.c.bf16 %v571, %v570
      %v975 = vpack.c.bf16 %v573, %v572
      %v976 = vpack.c.bf16 %v575, %v574
      %v977 = vpack.c.bf16 %v577, %v576
      %v978 = vpack.c.bf16 %v579, %v578
      %v979 = vpack.c.bf16 %v581, %v580
      %v980 = vpack.c.bf16 %v583, %v582
      %v981 = vpack.c.bf16 %v585, %v584
      %v982 = vpack.c.bf16 %v587, %v586
      %v983 = vpack.c.bf16 %v589, %v588
      %v984 = vpack.c.bf16 %v591, %v590
      %v985 = vpack.c.bf16 %v593, %v592
      %v986 = vpack.c.bf16 %v595, %v594
      %v987 = vpack.c.bf16 %v597, %v596
      %v988 = vpack.c.bf16 %v599, %v598
      %v989 = vpack.c.bf16 %v601, %v600
      %v990 = vpack.c.bf16 %v603, %v602
      %v991 = vpack.c.bf16 %v605, %v604
      %v992 = vpack.c.bf16 %v607, %v606
      %v993 = vpack.c.bf16 %v609, %v608
      %v994 = vpack.c.bf16 %v611, %v610
      %v995 = vpack.c.bf16 %v613, %v612
      %v996 = vpack.c.bf16 %v615, %v614
      %v997 = vpack.c.bf16 %v617, %v616
      %v998 = vpack.c.bf16 %v619, %v618
      %v999 = vpack.c.bf16 %v621, %v620
      %v1000 = vpack.c.bf16 %v623, %v622
      %v1001 = vpack.c.bf16 %v625, %v624
      %v1002 = vpack.c.bf16 %v627, %v626
      %v1003 = vpack.c.bf16 %v629, %v628
      %v1004 = vpack.c.bf16 %v631, %v630
      %v1005 = vpack.c.bf16 %v633, %v632
      %v1006 = vpack.c.bf16 %v635, %v634
      %v1007 = vpack.c.bf16 %v637, %v636
      %v1008 = vpack.c.bf16 %v639, %v638
      %v1009 = vpack.c.bf16 %v641, %v640
      %v1010 = vpack.c.bf16 %v643, %v642
      %v1011 = vpack.c.bf16 %v645, %v644
      %v1012 = vpack.c.bf16 %v647, %v646
      %v1013 = vpack.c.bf16 %v649, %v648
      %v1014 = vpack.c.bf16 %v651, %v650
      %v1015 = vpack.c.bf16 %v653, %v652
      %v1016 = vpack.c.bf16 %v655, %v654
      %v1017 = vpack.c.bf16 %v657, %v656
      %v1018 = vpack.c.bf16 %v659, %v658
      %v1019 = vpack.c.bf16 %v661, %v660
      %v1020 = vpack.c.bf16 %v663, %v662
      %v1021 = vpack.c.bf16 %v665, %v664
      %v1022 = vpack.c.bf16 %v667, %v666
      %v1023 = vpack.c.bf16 %v669, %v668
      %v1024 = vpack.c.bf16 %v671, %v670
      %v1025 = vpack.c.bf16 %v673, %v672
      %v1026 = vpack.c.bf16 %v675, %v674
      %v1027 = vpack.c.bf16 %v677, %v676
      %v1028 = vpack.c.bf16 %v679, %v678
      %v1029 = vpack.c.bf16 %v681, %v680
      %v1030 = vpack.c.bf16 %v683, %v682
      %v1031 = vpack.c.bf16 %v685, %v684
      %v1032 = vpack.c.bf16 %v687, %v686
      %v1033 = vpack.c.bf16 %v689, %v688
      %v1034 = vpack.c.bf16 %v691, %v690
      %v1035 = vpack.c.bf16 %v693, %v692
      %v1036 = vpack.c.bf16 %v695, %v694
      %v1037 = vpack.c.bf16 %v697, %v696
      %v1038 = vpack.c.bf16 %v699, %v698
      %v1039 = vpack.c.bf16 %v701, %v700
      %v1040 = vpack.c.bf16 %v703, %v702
      %v1041 = vpack.c.bf16 %v705, %v704
      %v1042 = vpack.c.bf16 %v707, %v706
      %v1043 = vpack.c.bf16 %v709, %v708
      %v1044 = vpack.c.bf16 %v711, %v710
      %v1045 = vpack.c.bf16 %v713, %v712
      %v1046 = vpack.c.bf16 %v715, %v714
      %v1047 = vpack.c.bf16 %v717, %v716
      %v1048 = vpack.c.bf16 %v719, %v718
      %v1049 = vpack.c.bf16 %v721, %v720
      %v1050 = vpack.c.bf16 %v723, %v722
      %v1051 = vpack.c.bf16 %v725, %v724
      %v1052 = vpack.c.bf16 %v727, %v726
      %v1053 = vpack.c.bf16 %v729, %v728
      %v1054 = vpack.c.bf16 %v731, %v730
      %v1055 = vpack.c.bf16 %v733, %v732
      %v1056 = vpack.c.bf16 %v735, %v734
      %v1057 = vpack.c.bf16 %v737, %v736
      %v1058 = vpack.c.bf16 %v739, %v738
      %v1059 = vpack.c.bf16 %v741, %v740
      %v1060 = vpack.c.bf16 %v743, %v742
      %v1061 = vpack.c.bf16 %v745, %v744
      %v1062 = vpack.c.bf16 %v747, %v746
      %v1063 = vpack.c.bf16 %v749, %v748
      %v1064 = vpack.c.bf16 %v751, %v750
      %v1065 = vpack.c.bf16 %v753, %v752
      %v1066 = vpack.c.bf16 %v755, %v754
      %v1067 = vpack.c.bf16 %v757, %v756
      %v1068 = vpack.c.bf16 %v759, %v758
      %v1069 = vpack.c.bf16 %v761, %v760
      %v1070 = vpack.c.bf16 %v763, %v762
      %v1071 = vpack.c.bf16 %v765, %v764
      %v1072 = vpack.c.bf16 %v767, %v766
      %v1073 = vpack.c.bf16 %v769, %v768
      %v1074 = vpack.c.bf16 %v771, %v770
      %v1075 = vpack.c.bf16 %v773, %v772
      %v1076 = vpack.c.bf16 %v775, %v774
      %v1077 = vpack.c.bf16 %v777, %v776
      %v1078 = vpack.c.bf16 %v779, %v778
      %v1079 = vpack.c.bf16 %v781, %v780
      %v1080 = vpack.c.bf16 %v783, %v782
      %v1081 = vpack.c.bf16 %v785, %v784
      %v1082 = vpack.c.bf16 %v787, %v786
      %v1083 = vpack.c.bf16 %v789, %v788
      %v1084 = vpack.c.bf16 %v791, %v790
      %v1085 = vpack.c.bf16 %v793, %v792
      %v1086 = vpack.c.bf16 %v795, %v794
      %v1087 = vpack.c.bf16 %v797, %v796
      %v1088 = vpack.c.bf16 %v799, %v798
      %v1089 = vpack.c.bf16 %v801, %v800
      %v1090 = vpack.c.bf16 %v803, %v802
      %v1091 = vpack.c.bf16 %v805, %v804
      %v1092 = vpack.c.bf16 %v807, %v806
      %v1093 = vpack.c.bf16 %v809, %v808
      %v1094 = vpack.c.bf16 %v811, %v810
      %v1095 = vpack.c.bf16 %v813, %v812
      %v1096 = vpack.c.bf16 %v815, %v814
      %v1097 = vpack.c.bf16 %v817, %v816
      %v1098 = vpack.c.bf16 %v819, %v818
      %v1099 = vpack.c.bf16 %v821, %v820
      %v1100 = vpack.c.bf16 %v823, %v822
      %v1101 = vpack.c.bf16 %v825, %v824
      %v1102 = vpack.c.bf16 %v827, %v826
      %v1103 = vpack.c.bf16 %v829, %v828
      %v1104 = vpack.c.bf16 %v831, %v830
      %v1105 = vpack.c.bf16 %v833, %v832
      %v1106 = vpack.c.bf16 %v835, %v834
      %v1107 = vpack.c.bf16 %v837, %v836
      %v1108 = vpack.c.bf16 %v839, %v838
      %v1109 = vpack.c.bf16 %v841, %v840
      %v1110 = vpack.c.bf16 %v843, %v842
      %v1111 = vpack.c.bf16 %v845, %v844
      %v1112 = vpack.c.bf16 %v847, %v846
      %v1113 = vpack.c.bf16 %v849, %v848
      %v1114 = vpack.c.bf16 %v851, %v850
      %v1115 = vpack.c.bf16 %v853, %v852
      %v1116 = vpack.c.bf16 %v855, %v854
      %v1117 = vpack.c.bf16 %v857, %v856
      %v1118 = vpack.c.bf16 %v859, %v858
      %v1119 = vpack.c.bf16 %v861, %v860
      %v1120 = vpack.c.bf16 %v863, %v862
      %v1121 = vpack.c.bf16 %v865, %v864
      %v1122 = vpack.c.bf16 %v867, %v866
      %v1123 = vpack.c.bf16 %v869, %v868
      %v1124 = vpack.c.bf16 %v871, %v870
      %v1125 = vpack.c.bf16 %v873, %v872
      %v1126 = vpack.c.bf16 %v875, %v874
      %v1127 = vpack.c.bf16 %v877, %v876
      %v1128 = vpack.c.bf16 %v879, %v878
      %v1129 = vpack.c.bf16 %v881, %v880
      %v1130 = vpack.c.bf16 %v883, %v882
      %v1131 = vpack.c.bf16 %v885, %v884
      %v1132 = vpack.c.bf16 %v887, %v886
      %v1133 = vpack.c.bf16 %v889, %v888
      %v1134 = vpack.c.bf16 %v891, %v890
      %v1135 = vpack.c.bf16 %v893, %v892
      %v1136 = vpack.c.bf16 %v895, %v894
      %v1137 = vpack.c.bf16 %v897, %v896
      %v1138 = vld [vmem:[%s244] sm:$0xff]
      %v1139 = vld [vmem:[%s244 + $0x8] sm:$0xff]
      %v1140 = vld [vmem:[%s244 + $0x10] sm:$0xff]
      %v1141 = vld [vmem:[%s244 + $0x18] sm:$0xff]
      %v1142 = vld [vmem:[%s244 + $0x20] sm:$0xff]
      %v1143 = vld [vmem:[%s244 + $0x28] sm:$0xff]
      %v1144 = vld [vmem:[%s244 + $0x30] sm:$0xff]
      %v1145 = vld [vmem:[%s244 + $0x38] sm:$0xff]
      %v1146 = vld [vmem:[%s244 + $0x40] sm:$0xff]
      %v1147 = vld [vmem:[%s244 + $0x48] sm:$0xff]
      %v1298 = vunpack.c.l.b16 %v268
      %v1299 = vunpack.c.h.b16 %v268
      %v1300 = vunpack.c.l.b16 %v269
      %v1301 = vunpack.c.h.b16 %v269
      %v1302 = vunpack.c.l.b16 %v270
      %v1303 = vunpack.c.h.b16 %v270
      %v1304 = vunpack.c.l.b16 %v271
      %v1305 = vunpack.c.h.b16 %v271
      %v1306 = vunpack.c.l.b16 %v272
      %v1307 = vunpack.c.h.b16 %v272
      %v1308 = vunpack.c.l.b16 %v273
      %v1309 = vunpack.c.h.b16 %v273
      %v1310 = vunpack.c.l.b16 %v274
      %v1311 = vunpack.c.h.b16 %v274
      %v1312 = vunpack.c.l.b16 %v275
      %v1313 = vunpack.c.h.b16 %v275
      %v1314 = vunpack.c.l.b16 %v276
      %v1315 = vunpack.c.h.b16 %v276
      %v1316 = vunpack.c.l.b16 %v277
      %v1317 = vunpack.c.h.b16 %v277
      %v1318 = vunpack.c.l.b16 %v278
      %v1319 = vunpack.c.h.b16 %v278
      %v1320 = vunpack.c.l.b16 %v279
      %v1321 = vunpack.c.h.b16 %v279
      %v1322 = vunpack.c.l.b16 %v280
      %v1323 = vunpack.c.h.b16 %v280
      %v1324 = vunpack.c.l.b16 %v281
      %v1325 = vunpack.c.h.b16 %v281
      %v1326 = vunpack.c.l.b16 %v282
      %v1327 = vunpack.c.h.b16 %v282
      %v1328 = vunpack.c.l.b16 %v283
      %v1329 = vunpack.c.h.b16 %v283
      %v1330 = vunpack.c.l.b16 %v284
      %v1331 = vunpack.c.h.b16 %v284
      %v1332 = vunpack.c.l.b16 %v285
      %v1333 = vunpack.c.h.b16 %v285
      %v1334 = vunpack.c.l.b16 %v286
      %v1335 = vunpack.c.h.b16 %v286
      %v1336 = vunpack.c.l.b16 %v287
      %v1337 = vunpack.c.h.b16 %v287
      %v1338 = vunpack.c.l.b16 %v288
      %v1339 = vunpack.c.h.b16 %v288
      %v1340 = vunpack.c.l.b16 %v289
      %v1341 = vunpack.c.h.b16 %v289
      %v1342 = vunpack.c.l.b16 %v290
      %v1343 = vunpack.c.h.b16 %v290
      %v1344 = vunpack.c.l.b16 %v291
      %v1345 = vunpack.c.h.b16 %v291
      %v1346 = vunpack.c.l.b16 %v292
      %v1347 = vunpack.c.h.b16 %v292
      %v1348 = vunpack.c.l.b16 %v293
      %v1349 = vunpack.c.h.b16 %v293
      %v1350 = vunpack.c.l.b16 %v294
      %v1351 = vunpack.c.h.b16 %v294
      %v1352 = vunpack.c.l.b16 %v295
      %v1353 = vunpack.c.h.b16 %v295
      %v1354 = vunpack.c.l.b16 %v296
      %v1355 = vunpack.c.h.b16 %v296
      %v1356 = vunpack.c.l.b16 %v297
      %v1357 = vunpack.c.h.b16 %v297
      %v1358 = vunpack.c.l.b16 %v298
      %v1359 = vunpack.c.h.b16 %v298
      %v1360 = vunpack.c.l.b16 %v299
      %v1361 = vunpack.c.h.b16 %v299
      %v1362 = vunpack.c.l.b16 %v300
      %v1363 = vunpack.c.h.b16 %v300
      %v1364 = vunpack.c.l.b16 %v301
      %v1365 = vunpack.c.h.b16 %v301
      %v1366 = vunpack.c.l.b16 %v302
      %v1367 = vunpack.c.h.b16 %v302
      %v1368 = vunpack.c.l.b16 %v303
      %v1369 = vunpack.c.h.b16 %v303
      %v1370 = vunpack.c.l.b16 %v304
      %v1371 = vunpack.c.h.b16 %v304
      %v1372 = vunpack.c.l.b16 %v305
      %v1373 = vunpack.c.h.b16 %v305
      %v1374 = vunpack.c.l.b16 %v306
      %v1375 = vunpack.c.h.b16 %v306
      %v1376 = vunpack.c.l.b16 %v307
      %v1377 = vunpack.c.h.b16 %v307
      %v1378 = vunpack.c.l.b16 %v308
      %v1379 = vunpack.c.h.b16 %v308
      %v1380 = vunpack.c.l.b16 %v309
      %v1381 = vunpack.c.h.b16 %v309
      %v1382 = vunpack.c.l.b16 %v310
      %v1383 = vunpack.c.h.b16 %v310
      %v1384 = vunpack.c.l.b16 %v311
      %v1385 = vunpack.c.h.b16 %v311
      %v1386 = vunpack.c.l.b16 %v312
      %v1387 = vunpack.c.h.b16 %v312
      %v1388 = vunpack.c.l.b16 %v313
      %v1389 = vunpack.c.h.b16 %v313
      %v1390 = vunpack.c.l.b16 %v314
      %v1391 = vunpack.c.h.b16 %v314
      %v1392 = vunpack.c.l.b16 %v315
      %v1393 = vunpack.c.h.b16 %v315
      %v1394 = vunpack.c.l.b16 %v316
      %v1395 = vunpack.c.h.b16 %v316
      %v1396 = vunpack.c.l.b16 %v317
      %v1397 = vunpack.c.h.b16 %v317
      %v1398 = vunpack.c.l.b16 %v318
      %v1399 = vunpack.c.h.b16 %v318
      %v1400 = vunpack.c.l.b16 %v319
      %v1401 = vunpack.c.h.b16 %v319
      %v1402 = vunpack.c.l.b16 %v320
      %v1403 = vunpack.c.h.b16 %v320
      %v1404 = vunpack.c.l.b16 %v321
      %v1405 = vunpack.c.h.b16 %v321
      %v1406 = vunpack.c.l.b16 %v322
      %v1407 = vunpack.c.h.b16 %v322
      %v1408 = vunpack.c.l.b16 %v323
      %v1409 = vunpack.c.h.b16 %v323
      %v1410 = vunpack.c.l.b16 %v324
      %v1411 = vunpack.c.h.b16 %v324
      %v1412 = vunpack.c.l.b16 %v325
      %v1413 = vunpack.c.h.b16 %v325
      %v1414 = vunpack.c.l.b16 %v326
      %v1415 = vunpack.c.h.b16 %v326
      %v1416 = vunpack.c.l.b16 %v327
      %v1417 = vunpack.c.h.b16 %v327
      %v1418 = vunpack.c.l.b16 %v328
      %v1419 = vunpack.c.h.b16 %v328
      %v1420 = vunpack.c.l.b16 %v329
      %v1421 = vunpack.c.h.b16 %v329
      %v1422 = vunpack.c.l.b16 %v330
      %v1423 = vunpack.c.h.b16 %v330
      %v1424 = vunpack.c.l.b16 %v331
      %v1425 = vunpack.c.h.b16 %v331
      %v1426 = vunpack.c.l.b16 %v332
      %v1427 = vunpack.c.h.b16 %v332
      %v1428 = vunpack.c.l.b16 %v333
      %v1429 = vunpack.c.h.b16 %v333
      %v1430 = vunpack.c.l.b16 %v334
      %v1431 = vunpack.c.h.b16 %v334
      %v1432 = vunpack.c.l.b16 %v335
      %v1433 = vunpack.c.h.b16 %v335
      %v1434 = vunpack.c.l.b16 %v336
      %v1435 = vunpack.c.h.b16 %v336
      %v1436 = vunpack.c.l.b16 %v337
      %v1437 = vunpack.c.h.b16 %v337
      %v1438 = vunpack.c.l.b16 %v338
      %v1439 = vunpack.c.h.b16 %v338
      %v1440 = vunpack.c.l.b16 %v339
      %v1441 = vunpack.c.h.b16 %v339
      %v1442 = vunpack.c.l.b16 %v340
      %v1443 = vunpack.c.h.b16 %v340
      %v1444 = vunpack.c.l.b16 %v341
      %v1445 = vunpack.c.h.b16 %v341
      %v1446 = vunpack.c.l.b16 %v342
      %v1447 = vunpack.c.h.b16 %v342
      %v1448 = vunpack.c.l.b16 %v343
      %v1449 = vunpack.c.h.b16 %v343
      %v1450 = vunpack.c.l.b16 %v344
      %v1451 = vunpack.c.h.b16 %v344
      %v1452 = vunpack.c.l.b16 %v345
      %v1453 = vunpack.c.h.b16 %v345
      %v1454 = vunpack.c.l.b16 %v346
      %v1455 = vunpack.c.h.b16 %v346
      %v1456 = vunpack.c.l.b16 %v347
      %v1457 = vunpack.c.h.b16 %v347
      %v1458 = vunpack.c.l.b16 %v348
      %v1459 = vunpack.c.h.b16 %v348
      %v1460 = vunpack.c.l.b16 %v349
      %v1461 = vunpack.c.h.b16 %v349
      %v1462 = vunpack.c.l.b16 %v350
      %v1463 = vunpack.c.h.b16 %v350
      %v1464 = vunpack.c.l.b16 %v351
      %v1465 = vunpack.c.h.b16 %v351
      %v1466 = vunpack.c.l.b16 %v352
      %v1467 = vunpack.c.h.b16 %v352
      %v1468 = vunpack.c.l.b16 %v353
      %v1469 = vunpack.c.h.b16 %v353
      %v1470 = vunpack.c.l.b16 %v354
      %v1471 = vunpack.c.h.b16 %v354
      %v1472 = vunpack.c.l.b16 %v355
      %v1473 = vunpack.c.h.b16 %v355
      %v1474 = vunpack.c.l.b16 %v356
      %v1475 = vunpack.c.h.b16 %v356
      %v1476 = vunpack.c.l.b16 %v357
      %v1477 = vunpack.c.h.b16 %v357
      %v1478 = vunpack.c.l.b16 %v358
      %v1479 = vunpack.c.h.b16 %v358
      %v1480 = vunpack.c.l.b16 %v359
      %v1481 = vunpack.c.h.b16 %v359
      %v1482 = vunpack.c.l.b16 %v360
      %v1483 = vunpack.c.h.b16 %v360
      %v1484 = vunpack.c.l.b16 %v361
      %v1485 = vunpack.c.h.b16 %v361
      %v1486 = vunpack.c.l.b16 %v362
      %v1487 = vunpack.c.h.b16 %v362
      %v1488 = vunpack.c.l.b16 %v363
      %v1489 = vunpack.c.h.b16 %v363
      %v1490 = vunpack.c.l.b16 %v364
      %v1491 = vunpack.c.h.b16 %v364
      %v1492 = vunpack.c.l.b16 %v365
      %v1493 = vunpack.c.h.b16 %v365
      %v1494 = vunpack.c.l.b16 %v366
      %v1495 = vunpack.c.h.b16 %v366
      %v1496 = vunpack.c.l.b16 %v367
      %v1497 = vunpack.c.h.b16 %v367
      %v1498 = vunpack.c.l.b16 %v368
      %v1499 = vunpack.c.h.b16 %v368
      %v1500 = vunpack.c.l.b16 %v369
      %v1501 = vunpack.c.h.b16 %v369
      %v1502 = vunpack.c.l.b16 %v370
      %v1503 = vunpack.c.h.b16 %v370
      %v1504 = vunpack.c.l.b16 %v371
      %v1505 = vunpack.c.h.b16 %v371
      %v1506 = vunpack.c.l.b16 %v372
      %v1507 = vunpack.c.h.b16 %v372
      %v1508 = vunpack.c.l.b16 %v373
      %v1509 = vunpack.c.h.b16 %v373
      %v1510 = vunpack.c.l.b16 %v374
      %v1511 = vunpack.c.h.b16 %v374
      %v1512 = vunpack.c.l.b16 %v375
      %v1513 = vunpack.c.h.b16 %v375
      %v1514 = vunpack.c.l.b16 %v376
      %v1515 = vunpack.c.h.b16 %v376
      %v1516 = vunpack.c.l.b16 %v377
      %v1517 = vunpack.c.h.b16 %v377
      %v1518 = vunpack.c.l.b16 %v378
      %v1519 = vunpack.c.h.b16 %v378
      %v1520 = vunpack.c.l.b16 %v379
      %v1521 = vunpack.c.h.b16 %v379
      %v1522 = vunpack.c.l.b16 %v380
      %v1523 = vunpack.c.h.b16 %v380
      %v1524 = vunpack.c.l.b16 %v381
      %v1525 = vunpack.c.h.b16 %v381
      %v1526 = vunpack.c.l.b16 %v382
      %v1527 = vunpack.c.h.b16 %v382
      %v1528 = vunpack.c.l.b16 %v383
      %v1529 = vunpack.c.h.b16 %v383
      %v1530 = vunpack.c.l.b16 %v384
      %v1531 = vunpack.c.h.b16 %v384
      %v1532 = vunpack.c.l.b16 %v385
      %v1533 = vunpack.c.h.b16 %v385
      %v1534 = vunpack.c.l.b16 %v386
      %v1535 = vunpack.c.h.b16 %v386
      %v1536 = vunpack.c.l.b16 %v387
      %v1537 = vunpack.c.h.b16 %v387
      %v1538 = vunpack.c.l.b16 %v388
      %v1539 = vunpack.c.h.b16 %v388
      %v1540 = vunpack.c.l.b16 %v389
      %v1541 = vunpack.c.h.b16 %v389
      %v1542 = vunpack.c.l.b16 %v390
      %v1543 = vunpack.c.h.b16 %v390
      %v1544 = vunpack.c.l.b16 %v391
      %v1545 = vunpack.c.h.b16 %v391
      %v1546 = vunpack.c.l.b16 %v392
      %v1547 = vunpack.c.h.b16 %v392
      %v1548 = vunpack.c.l.b16 %v393
      %v1549 = vunpack.c.h.b16 %v393
      %v1550 = vunpack.c.l.b16 %v394
      %v1551 = vunpack.c.h.b16 %v394
      %v1552 = vunpack.c.l.b16 %v395
      %v1553 = vunpack.c.h.b16 %v395
      %v1554 = vunpack.c.l.b16 %v396
      %v1555 = vunpack.c.h.b16 %v396
      %v1556 = vunpack.c.l.b16 %v397
      %v1557 = vunpack.c.h.b16 %v397
      %v1558 = vunpack.c.l.b16 %v398
      %v1559 = vunpack.c.h.b16 %v398
      %v1560 = vunpack.c.l.b16 %v399
      %v1561 = vunpack.c.h.b16 %v399
      %v1562 = vunpack.c.l.b16 %v400
      %v1563 = vunpack.c.h.b16 %v400
      %v1564 = vunpack.c.l.b16 %v401
      %v1565 = vunpack.c.h.b16 %v401
      %v1566 = vunpack.c.l.b16 %v402
      %v1567 = vunpack.c.h.b16 %v402
      %v1568 = vunpack.c.l.b16 %v403
      %v1569 = vunpack.c.h.b16 %v403
      %v1570 = vunpack.c.l.b16 %v404
      %v1571 = vunpack.c.h.b16 %v404
      %v1572 = vunpack.c.l.b16 %v405
      %v1573 = vunpack.c.h.b16 %v405
      %v1574 = vunpack.c.l.b16 %v406
      %v1575 = vunpack.c.h.b16 %v406
      %v1576 = vunpack.c.l.b16 %v407
      %v1577 = vunpack.c.h.b16 %v407
      %v1578 = vunpack.c.l.b16 %v408
      %v1579 = vunpack.c.h.b16 %v408
      %v1580 = vunpack.c.l.b16 %v409
      %v1581 = vunpack.c.h.b16 %v409
      %v1582 = vunpack.c.l.b16 %v410
      %v1583 = vunpack.c.h.b16 %v410
      %v1584 = vunpack.c.l.b16 %v411
      %v1585 = vunpack.c.h.b16 %v411
      %v1586 = vunpack.c.l.b16 %v412
      %v1587 = vunpack.c.h.b16 %v412
      %v1588 = vunpack.c.l.b16 %v413
      %v1589 = vunpack.c.h.b16 %v413
      %v1590 = vunpack.c.l.b16 %v414
      %v1591 = vunpack.c.h.b16 %v414
      %v1592 = vunpack.c.l.b16 %v415
      %v1593 = vunpack.c.h.b16 %v415
      %v1594 = vunpack.c.l.b16 %v416
      %v1595 = vunpack.c.h.b16 %v416
      %v1596 = vunpack.c.l.b16 %v417
      %v1597 = vunpack.c.h.b16 %v417
      %v1598 = vpack.c.b16 %v1328, %v1298
      %v1599 = vpack.c.b16 %v1329, %v1299
      %v1600 = vpack.c.b16 %v1330, %v1300
      %v1601 = vpack.c.b16 %v1331, %v1301
      %v1602 = vpack.c.b16 %v1332, %v1302
      %v1603 = vpack.c.b16 %v1333, %v1303
      %v1604 = vpack.c.b16 %v1334, %v1304
      %v1605 = vpack.c.b16 %v1335, %v1305
      %v1606 = vpack.c.b16 %v1336, %v1306
      %v1607 = vpack.c.b16 %v1337, %v1307
      %v1608 = vpack.c.b16 %v1338, %v1308
      %v1609 = vpack.c.b16 %v1339, %v1309
      %v1610 = vpack.c.b16 %v1340, %v1310
      %v1611 = vpack.c.b16 %v1341, %v1311
      %v1612 = vpack.c.b16 %v1342, %v1312
      %v1613 = vpack.c.b16 %v1343, %v1313
      %v1614 = vpack.c.b16 %v1344, %v1314
      %v1615 = vpack.c.b16 %v1345, %v1315
      %v1616 = vpack.c.b16 %v1346, %v1316
      %v1617 = vpack.c.b16 %v1347, %v1317
      %v1618 = vpack.c.b16 %v1348, %v1318
      %v1619 = vpack.c.b16 %v1349, %v1319
      %v1620 = vpack.c.b16 %v1350, %v1320
      %v1621 = vpack.c.b16 %v1351, %v1321
      %v1622 = vpack.c.b16 %v1352, %v1322
      %v1623 = vpack.c.b16 %v1353, %v1323
      %v1624 = vpack.c.b16 %v1354, %v1324
      %v1625 = vpack.c.b16 %v1355, %v1325
      %v1626 = vpack.c.b16 %v1356, %v1326
      %v1627 = vpack.c.b16 %v1357, %v1327
      %v1628 = vpack.c.b16 %v1388, %v1358
      %v1629 = vpack.c.b16 %v1389, %v1359
      %v1630 = vpack.c.b16 %v1390, %v1360
      %v1631 = vpack.c.b16 %v1391, %v1361
      %v1632 = vpack.c.b16 %v1392, %v1362
      %v1633 = vpack.c.b16 %v1393, %v1363
      %v1634 = vpack.c.b16 %v1394, %v1364
      %v1635 = vpack.c.b16 %v1395, %v1365
      %v1636 = vpack.c.b16 %v1396, %v1366
      %v1637 = vpack.c.b16 %v1397, %v1367
      %v1638 = vpack.c.b16 %v1398, %v1368
      %v1639 = vpack.c.b16 %v1399, %v1369
      %v1640 = vpack.c.b16 %v1400, %v1370
      %v1641 = vpack.c.b16 %v1401, %v1371
      %v1642 = vpack.c.b16 %v1402, %v1372
      %v1643 = vpack.c.b16 %v1403, %v1373
      %v1644 = vpack.c.b16 %v1404, %v1374
      %v1645 = vpack.c.b16 %v1405, %v1375
      %v1646 = vpack.c.b16 %v1406, %v1376
      %v1647 = vpack.c.b16 %v1407, %v1377
      %v1648 = vpack.c.b16 %v1408, %v1378
      %v1649 = vpack.c.b16 %v1409, %v1379
      %v1650 = vpack.c.b16 %v1410, %v1380
      %v1651 = vpack.c.b16 %v1411, %v1381
      %v1652 = vpack.c.b16 %v1412, %v1382
      %v1653 = vpack.c.b16 %v1413, %v1383
      %v1654 = vpack.c.b16 %v1414, %v1384
      %v1655 = vpack.c.b16 %v1415, %v1385
      %v1656 = vpack.c.b16 %v1416, %v1386
      %v1657 = vpack.c.b16 %v1417, %v1387
      %v1658 = vpack.c.b16 %v1448, %v1418
      %v1659 = vpack.c.b16 %v1449, %v1419
      %v1660 = vpack.c.b16 %v1450, %v1420
      %v1661 = vpack.c.b16 %v1451, %v1421
      %v1662 = vpack.c.b16 %v1452, %v1422
      %v1663 = vpack.c.b16 %v1453, %v1423
      %v1664 = vpack.c.b16 %v1454, %v1424
      %v1665 = vpack.c.b16 %v1455, %v1425
      %v1666 = vpack.c.b16 %v1456, %v1426
      %v1667 = vpack.c.b16 %v1457, %v1427
      %v1668 = vpack.c.b16 %v1458, %v1428
      %v1669 = vpack.c.b16 %v1459, %v1429
      %v1670 = vpack.c.b16 %v1460, %v1430
      %v1671 = vpack.c.b16 %v1461, %v1431
      %v1672 = vpack.c.b16 %v1462, %v1432
      %v1673 = vpack.c.b16 %v1463, %v1433
      %v1674 = vpack.c.b16 %v1464, %v1434
      %v1675 = vpack.c.b16 %v1465, %v1435
      %v1676 = vpack.c.b16 %v1466, %v1436
      %v1677 = vpack.c.b16 %v1467, %v1437
      %v1678 = vpack.c.b16 %v1468, %v1438
      %v1679 = vpack.c.b16 %v1469, %v1439
      %v1680 = vpack.c.b16 %v1470, %v1440
      %v1681 = vpack.c.b16 %v1471, %v1441
      %v1682 = vpack.c.b16 %v1472, %v1442
      %v1683 = vpack.c.b16 %v1473, %v1443
      %v1684 = vpack.c.b16 %v1474, %v1444
      %v1685 = vpack.c.b16 %v1475, %v1445
      %v1686 = vpack.c.b16 %v1476, %v1446
      %v1687 = vpack.c.b16 %v1477, %v1447
      %v1688 = vpack.c.b16 %v1508, %v1478
      %v1689 = vpack.c.b16 %v1509, %v1479
      %v1690 = vpack.c.b16 %v1510, %v1480
      %v1691 = vpack.c.b16 %v1511, %v1481
      %v1692 = vpack.c.b16 %v1512, %v1482
      %v1693 = vpack.c.b16 %v1513, %v1483
      %v1694 = vpack.c.b16 %v1514, %v1484
      %v1695 = vpack.c.b16 %v1515, %v1485
      %v1696 = vpack.c.b16 %v1516, %v1486
      %v1697 = vpack.c.b16 %v1517, %v1487
      %v1698 = vpack.c.b16 %v1518, %v1488
      %v1699 = vpack.c.b16 %v1519, %v1489
      %v1700 = vpack.c.b16 %v1520, %v1490
      %v1701 = vpack.c.b16 %v1521, %v1491
      %v1702 = vpack.c.b16 %v1522, %v1492
      %v1703 = vpack.c.b16 %v1523, %v1493
      %v1704 = vpack.c.b16 %v1524, %v1494
      %v1705 = vpack.c.b16 %v1525, %v1495
      %v1706 = vpack.c.b16 %v1526, %v1496
      %v1707 = vpack.c.b16 %v1527, %v1497
      %v1708 = vpack.c.b16 %v1528, %v1498
      %v1709 = vpack.c.b16 %v1529, %v1499
      %v1710 = vpack.c.b16 %v1530, %v1500
      %v1711 = vpack.c.b16 %v1531, %v1501
      %v1712 = vpack.c.b16 %v1532, %v1502
      %v1713 = vpack.c.b16 %v1533, %v1503
      %v1714 = vpack.c.b16 %v1534, %v1504
      %v1715 = vpack.c.b16 %v1535, %v1505
      %v1716 = vpack.c.b16 %v1536, %v1506
      %v1717 = vpack.c.b16 %v1537, %v1507
      %v1718 = vpack.c.b16 %v1568, %v1538
      %v1719 = vpack.c.b16 %v1569, %v1539
      %v1720 = vpack.c.b16 %v1570, %v1540
      %v1721 = vpack.c.b16 %v1571, %v1541
      %v1722 = vpack.c.b16 %v1572, %v1542
      %v1723 = vpack.c.b16 %v1573, %v1543
      %v1724 = vpack.c.b16 %v1574, %v1544
      %v1725 = vpack.c.b16 %v1575, %v1545
      %v1726 = vpack.c.b16 %v1576, %v1546
      %v1727 = vpack.c.b16 %v1577, %v1547
      %v1728 = vpack.c.b16 %v1578, %v1548
      %v1729 = vpack.c.b16 %v1579, %v1549
      %v1730 = vpack.c.b16 %v1580, %v1550
      %v1731 = vpack.c.b16 %v1581, %v1551
      %v1732 = vpack.c.b16 %v1582, %v1552
      %v1733 = vpack.c.b16 %v1583, %v1553
      %v1734 = vpack.c.b16 %v1584, %v1554
      %v1735 = vpack.c.b16 %v1585, %v1555
      %v1736 = vpack.c.b16 %v1586, %v1556
      %v1737 = vpack.c.b16 %v1587, %v1557
      %v1738 = vpack.c.b16 %v1588, %v1558
      %v1739 = vpack.c.b16 %v1589, %v1559
      %v1740 = vpack.c.b16 %v1590, %v1560
      %v1741 = vpack.c.b16 %v1591, %v1561
      %v1742 = vpack.c.b16 %v1592, %v1562
      %v1743 = vpack.c.b16 %v1593, %v1563
      %v1744 = vpack.c.b16 %v1594, %v1564
      %v1745 = vpack.c.b16 %v1595, %v1565
      %v1746 = vpack.c.b16 %v1596, %v1566
      %v1747 = vpack.c.b16 %v1597, %v1567
      %1898 = vmatprep.subr.bf16.mxu0 0
      %1899 = vmatpush1.bf16.msra.mxu0 %v898
      %1900 = vmatprep.subr.bf16.mxu0 0
      %1901 = vmatpush1.bf16.msra.mxu0 %v899
      %1902 = vmatprep.subr.bf16.mxu0 0
      %1903 = vmatpush1.bf16.msra.mxu0 %v900
      %1904 = vmatprep.subr.bf16.mxu0 0
      %1905 = vmatpush1.bf16.msra.mxu0 %v901
      %1906 = vmatprep.subr.bf16.mxu0 0
      %1907 = vmatpush1.bf16.msra.mxu0 %v902
      %1908 = vmatprep.subr.bf16.mxu0 0
      %1909 = vmatpush1.bf16.msra.mxu0 %v903
      %1910 = vmatprep.subr.bf16.mxu0 0
      %1911 = vmatpush1.bf16.msra.mxu0 %v904
      %1912 = vmatprep.subr.bf16.mxu0 0
      %1913 = vmatpush1.bf16.msra.mxu0 %v905
      %1914 = vmatprep.subr.bf16.mxu0 0
      %1915 = vmatpush1.bf16.msra.mxu0 %v906
      %1916 = vmatprep.subr.bf16.mxu0 0
      %1917 = vmatpush1.bf16.msra.mxu0 %v907
      %1918 = vmatprep.subr.bf16.mxu0 0
      %1919 = vmatpush1.bf16.msra.mxu0 %v908
      %1920 = vmatprep.subr.bf16.mxu0 0
      %1921 = vmatpush1.bf16.msra.mxu0 %v909
      %1922 = vmatprep.subr.bf16.mxu0 0
      %1923 = vmatpush1.bf16.msra.mxu0 %v910
      %1924 = vmatprep.subr.bf16.mxu0 0
      %1925 = vmatpush1.bf16.msra.mxu0 %v911
      %1926 = vmatprep.subr.bf16.mxu0 0
      %1927 = vmatpush1.bf16.msra.mxu0 %v912
      %1928 = vmatprep.subr.bf16.mxu0 0
      %1929 = vmatpush1.bf16.msra.mxu0 %v913
      %1930 = vmatprep.mubr.bf16.mxu0 %v1599
      %1931 = vmatmul.mubr.bf16.gmra.mrb[0].mxu0 %v1598
      %v1932 = vpop.f32.mrb[0].mxu0
      %v1933 = vadd.f32 %v1138, %v1932
      %v1934 = vpop.f32.mrb[0].mxu0
      %v1935 = vpop.f32.mrb[0].mxu0
      %v1936 = vadd.f32 %v1139, %v1935
      %v1937 = vpop.f32.mrb[0].mxu0
      %1938 = vmatprep.mubr.bf16.mxu0 %v1629
      %1939 = vmatmul.mubr.bf16.gmra.mrb[0].mxu0 %v1628
      %v1940 = vpop.f32.mrb[0].mxu0
      %v1941 = vadd.f32 %v1140, %v1940
      %v1942 = vpop.f32.mrb[0].mxu0
      %v1943 = vpop.f32.mrb[0].mxu0
      %v1944 = vadd.f32 %v1141, %v1943
      %v1945 = vpop.f32.mrb[0].mxu0
      %1946 = vmatprep.mubr.bf16.mxu0 %v1659
      %1947 = vmatmul.mubr.bf16.gmra.mrb[0].mxu0 %v1658
      %v1948 = vpop.f32.mrb[0].mxu0
      %v1949 = vadd.f32 %v1142, %v1948
      %v1950 = vpop.f32.mrb[0].mxu0
      %v1951 = vpop.f32.mrb[0].mxu0
      %v1952 = vadd.f32 %v1143, %v1951
      %v1953 = vpop.f32.mrb[0].mxu0
      %1954 = vmatprep.mubr.bf16.mxu0 %v1689
      %1955 = vmatmul.mubr.bf16.gmra.mrb[0].mxu0 %v1688
      %v1956 = vpop.f32.mrb[0].mxu0
      %v1957 = vadd.f32 %v1144, %v1956
      %v1958 = vpop.f32.mrb[0].mxu0
      %v1959 = vpop.f32.mrb[0].mxu0
      %v1960 = vadd.f32 %v1145, %v1959
      %v1961 = vpop.f32.mrb[0].mxu0
      %1962 = vmatprep.mubr.bf16.mxu0 %v1719
      %1963 = vmatmul.mubr.bf16.gmra.mrb[0].mxu0 %v1718
      %v1964 = vpop.f32.mrb[0].mxu0
      %v1965 = vadd.f32 %v1146, %v1964
      %v1966 = vpop.f32.mrb[0].mxu0
      %v1967 = vpop.f32.mrb[0].mxu0
      %v1968 = vadd.f32 %v1147, %v1967
      %v1969 = vpop.f32.mrb[0].mxu0
      %1970 = vdwg.mxu0
      %1971 = vmatprep.subr.bf16.mxu0 0
      %1972 = vmatpush1.bf16.msra.mxu0 %v914
      %1973 = vmatprep.subr.bf16.mxu0 0
      %1974 = vmatpush1.bf16.msra.mxu0 %v915
      %1975 = vmatprep.subr.bf16.mxu0 0
      %1976 = vmatpush1.bf16.msra.mxu0 %v916
      %1977 = vmatprep.subr.bf16.mxu0 0
      %1978 = vmatpush1.bf16.msra.mxu0 %v917
      %1979 = vmatprep.subr.bf16.mxu0 0
      %1980 = vmatpush1.bf16.msra.mxu0 %v918
      %1981 = vmatprep.subr.bf16.mxu0 0
      %1982 = vmatpush1.bf16.msra.mxu0 %v919
      %1983 = vmatprep.subr.bf16.mxu0 0
      %1984 = vmatpush1.bf16.msra.mxu0 %v920
      %1985 = vmatprep.subr.bf16.mxu0 0
      %1986 = vmatpush1.bf16.msra.mxu0 %v921
      %1987 = vmatprep.subr.bf16.mxu0 0
      %1988 = vmatpush1.bf16.msra.mxu0 %v922
      %1989 = vmatprep.subr.bf16.mxu0 0
      %1990 = vmatpush1.bf16.msra.mxu0 %v923
      %1991 = vmatprep.subr.bf16.mxu0 0
      %1992 = vmatpush1.bf16.msra.mxu0 %v924
      %1993 = vmatprep.subr.bf16.mxu0 0
      %1994 = vmatpush1.bf16.msra.mxu0 %v925
      %1995 = vmatprep.subr.bf16.mxu0 0
      %1996 = vmatpush1.bf16.msra.mxu0 %v926
      %1997 = vmatprep.subr.bf16.mxu0 0
      %1998 = vmatpush1.bf16.msra.mxu0 %v927
      %1999 = vmatprep.subr.bf16.mxu0 0
      %2000 = vmatpush1.bf16.msra.mxu0 %v928
      %2001 = vmatprep.subr.bf16.mxu0 0
      %2002 = vmatpush1.bf16.msra.mxu0 %v929
      %2003 = vmatprep.mubr.bf16.mxu0 %v1601
      %2004 = vmatmul.mubr.bf16.gmra.mrb[0].mxu0 %v1600
      %v2005 = vpop.f32.mrb[0].mxu0
      %v2006 = vadd.f32 %v1933, %v2005
      %v2007 = vpop.f32.mrb[0].mxu0
      %v2008 = vpop.f32.mrb[0].mxu0
      %v2009 = vadd.f32 %v1936, %v2008
      %v2010 = vpop.f32.mrb[0].mxu0
      %2011 = vmatprep.mubr.bf16.mxu0 %v1631
      %2012 = vmatmul.mubr.bf16.gmra.mrb[0].mxu0 %v1630
      %v2013 = vpop.f32.mrb[0].mxu0
      %v2014 = vadd.f32 %v1941, %v2013
      %v2015 = vpop.f32.mrb[0].mxu0
      %v2016 = vpop.f32.mrb[0].mxu0
      %v2017 = vadd.f32 %v1944, %v2016
      %v2018 = vpop.f32.mrb[0].mxu0
      %2019 = vmatprep.mubr.bf16.mxu0 %v1661
      %2020 = vmatmul.mubr.bf16.gmra.mrb[0].mxu0 %v1660
      %v2021 = vpop.f32.mrb[0].mxu0
      %v2022 = vadd.f32 %v1949, %v2021
      %v2023 = vpop.f32.mrb[0].mxu0
      %v2024 = vpop.f32.mrb[0].mxu0
      %v2025 = vadd.f32 %v1952, %v2024
      %v2026 = vpop.f32.mrb[0].mxu0
      %2027 = vmatprep.mubr.bf16.mxu0 %v1691
      %2028 = vmatmul.mubr.bf16.gmra.mrb[0].mxu0 %v1690
      %v2029 = vpop.f32.mrb[0].mxu0
      %v2030 = vadd.f32 %v1957, %v2029
      %v2031 = vpop.f32.mrb[0].mxu0
      %v2032 = vpop.f32.mrb[0].mxu0
      %v2033 = vadd.f32 %v1960, %v2032
      %v2034 = vpop.f32.mrb[0].mxu0
      %2035 = vmatprep.mubr.bf16.mxu0 %v1721
      %2036 = vmatmul.mubr.bf16.gmra.mrb[0].mxu0 %v1720
      %v2037 = vpop.f32.mrb[0].mxu0
      %v2038 = vadd.f32 %v1965, %v2037
      %v2039 = vpop.f32.mrb[0].mxu0
      %v2040 = vpop.f32.mrb[0].mxu0
      %v2041 = vadd.f32 %v1968, %v2040
      %v2042 = vpop.f32.mrb[0].mxu0
      %2043 = vdwg.mxu0
      %2044 = vmatprep.subr.bf16.mxu0 0
      %2045 = vmatpush1.bf16.msra.mxu0 %v930
      %2046 = vmatprep.subr.bf16.mxu0 0
      %2047 = vmatpush1.bf16.msra.mxu0 %v931
      %2048 = vmatprep.subr.bf16.mxu0 0
      %2049 = vmatpush1.bf16.msra.mxu0 %v932
      %2050 = vmatprep.subr.bf16.mxu0 0
      %2051 = vmatpush1.bf16.msra.mxu0 %v933
      %2052 = vmatprep.subr.bf16.mxu0 0
      %2053 = vmatpush1.bf16.msra.mxu0 %v934
      %2054 = vmatprep.subr.bf16.mxu0 0
      %2055 = vmatpush1.bf16.msra.mxu0 %v935
      %2056 = vmatprep.subr.bf16.mxu0 0
      %2057 = vmatpush1.bf16.msra.mxu0 %v936
      %2058 = vmatprep.subr.bf16.mxu0 0
      %2059 = vmatpush1.bf16.msra.mxu0 %v937
      %2060 = vmatprep.subr.bf16.mxu0 0
      %2061 = vmatpush1.bf16.msra.mxu0 %v938
      %2062 = vmatprep.subr.bf16.mxu0 0
      %2063 = vmatpush1.bf16.msra.mxu0 %v939
      %2064 = vmatprep.subr.bf16.mxu0 0
      %2065 = vmatpush1.bf16.msra.mxu0 %v940
      %2066 = vmatprep.subr.bf16.mxu0 0
      %2067 = vmatpush1.bf16.msra.mxu0 %v941
      %2068 = vmatprep.subr.bf16.mxu0 0
      %2069 = vmatpush1.bf16.msra.mxu0 %v942
      %2070 = vmatprep.subr.bf16.mxu0 0
      %2071 = vmatpush1.bf16.msra.mxu0 %v943
      %2072 = vmatprep.subr.bf16.mxu0 0
      %2073 = vmatpush1.bf16.msra.mxu0 %v944
      %2074 = vmatprep.subr.bf16.mxu0 0
      %2075 = vmatpush1.bf16.msra.mxu0 %v945
      %2076 = vmatprep.mubr.bf16.mxu0 %v1603
      %2077 = vmatmul.mubr.bf16.gmra.mrb[0].mxu0 %v1602
      %v2078 = vpop.f32.mrb[0].mxu0
      %v2079 = vadd.f32 %v2006, %v2078
      %v2080 = vpop.f32.mrb[0].mxu0
      %v2081 = vpop.f32.mrb[0].mxu0
      %v2082 = vadd.f32 %v2009, %v2081
      %v2083 = vpop.f32.mrb[0].mxu0
      %2084 = vmatprep.mubr.bf16.mxu0 %v1633
      %2085 = vmatmul.mubr.bf16.gmra.mrb[0].mxu0 %v1632
      %v2086 = vpop.f32.mrb[0].mxu0
      %v2087 = vadd.f32 %v2014, %v2086
      %v2088 = vpop.f32.mrb[0].mxu0
      %v2089 = vpop.f32.mrb[0].mxu0
      %v2090 = vadd.f32 %v2017, %v2089
      %v2091 = vpop.f32.mrb[0].mxu0
      %2092 = vmatprep.mubr.bf16.mxu0 %v1663
      %2093 = vmatmul.mubr.bf16.gmra.mrb[0].mxu0 %v1662
      %v2094 = vpop.f32.mrb[0].mxu0
      %v2095 = vadd.f32 %v2022, %v2094
      %v2096 = vpop.f32.mrb[0].mxu0
      %v2097 = vpop.f32.mrb[0].mxu0
      %v2098 = vadd.f32 %v2025, %v2097
      %v2099 = vpop.f32.mrb[0].mxu0
      %2100 = vmatprep.mubr.bf16.mxu0 %v1693
      %2101 = vmatmul.mubr.bf16.gmra.mrb[0].mxu0 %v1692
      %v2102 = vpop.f32.mrb[0].mxu0
      %v2103 = vadd.f32 %v2030, %v2102
      %v2104 = vpop.f32.mrb[0].mxu0
      %v2105 = vpop.f32.mrb[0].mxu0
      %v2106 = vadd.f32 %v2033, %v2105
      %v2107 = vpop.f32.mrb[0].mxu0
      %2108 = vmatprep.mubr.bf16.mxu0 %v1723
      %2109 = vmatmul.mubr.bf16.gmra.mrb[0].mxu0 %v1722
      %v2110 = vpop.f32.mrb[0].mxu0
      %v2111 = vadd.f32 %v2038, %v2110
      %v2112 = vpop.f32.mrb[0].mxu0
      %v2113 = vpop.f32.mrb[0].mxu0
      %v2114 = vadd.f32 %v2041, %v2113
      %v2115 = vpop.f32.mrb[0].mxu0
      %2116 = vdwg.mxu0
      %2117 = vmatprep.subr.bf16.mxu0 0
      %2118 = vmatpush1.bf16.msra.mxu0 %v946
      %2119 = vmatprep.subr.bf16.mxu0 0
      %2120 = vmatpush1.bf16.msra.mxu0 %v947
      %2121 = vmatprep.subr.bf16.mxu0 0
      %2122 = vmatpush1.bf16.msra.mxu0 %v948
      %2123 = vmatprep.subr.bf16.mxu0 0
      %2124 = vmatpush1.bf16.msra.mxu0 %v949
      %2125 = vmatprep.subr.bf16.mxu0 0
      %2126 = vmatpush1.bf16.msra.mxu0 %v950
      %2127 = vmatprep.subr.bf16.mxu0 0
      %2128 = vmatpush1.bf16.msra.mxu0 %v951
      %2129 = vmatprep.subr.bf16.mxu0 0
      %2130 = vmatpush1.bf16.msra.mxu0 %v952
      %2131 = vmatprep.subr.bf16.mxu0 0
      %2132 = vmatpush1.bf16.msra.mxu0 %v953
      %2133 = vmatprep.subr.bf16.mxu0 0
      %2134 = vmatpush1.bf16.msra.mxu0 %v954
      %2135 = vmatprep.subr.bf16.mxu0 0
      %2136 = vmatpush1.bf16.msra.mxu0 %v955
      %2137 = vmatprep.subr.bf16.mxu0 0
      %2138 = vmatpush1.bf16.msra.mxu0 %v956
      %2139 = vmatprep.subr.bf16.mxu0 0
      %2140 = vmatpush1.bf16.msra.mxu0 %v957
      %2141 = vmatprep.subr.bf16.mxu0 0
      %2142 = vmatpush1.bf16.msra.mxu0 %v958
      %2143 = vmatprep.subr.bf16.mxu0 0
      %2144 = vmatpush1.bf16.msra.mxu0 %v959
      %2145 = vmatprep.subr.bf16.mxu0 0
      %2146 = vmatpush1.bf16.msra.mxu0 %v960
      %2147 = vmatprep.subr.bf16.mxu0 0
      %2148 = vmatpush1.bf16.msra.mxu0 %v961
      %2149 = vmatprep.mubr.bf16.mxu0 %v1605
      %2150 = vmatmul.mubr.bf16.gmra.mrb[0].mxu0 %v1604
      %v2151 = vpop.f32.mrb[0].mxu0
      %v2152 = vadd.f32 %v2079, %v2151
      %v2153 = vpop.f32.mrb[0].mxu0
      %v2154 = vpop.f32.mrb[0].mxu0
      %v2155 = vadd.f32 %v2082, %v2154
      %v2156 = vpop.f32.mrb[0].mxu0
      %2157 = vmatprep.mubr.bf16.mxu0 %v1635
      %2158 = vmatmul.mubr.bf16.gmra.mrb[0].mxu0 %v1634
      %v2159 = vpop.f32.mrb[0].mxu0
      %v2160 = vadd.f32 %v2087, %v2159
      %v2161 = vpop.f32.mrb[0].mxu0
      %v2162 = vpop.f32.mrb[0].mxu0
      %v2163 = vadd.f32 %v2090, %v2162
      %v2164 = vpop.f32.mrb[0].mxu0
      %2165 = vmatprep.mubr.bf16.mxu0 %v1665
      %2166 = vmatmul.mubr.bf16.gmra.mrb[0].mxu0 %v1664
      %v2167 = vpop.f32.mrb[0].mxu0
      %v2168 = vadd.f32 %v2095, %v2167
      %v2169 = vpop.f32.mrb[0].mxu0
      %v2170 = vpop.f32.mrb[0].mxu0
      %v2171 = vadd.f32 %v2098, %v2170
      %v2172 = vpop.f32.mrb[0].mxu0
      %2173 = vmatprep.mubr.bf16.mxu0 %v1695
      %2174 = vmatmul.mubr.bf16.gmra.mrb[0].mxu0 %v1694
      %v2175 = vpop.f32.mrb[0].mxu0
      %v2176 = vadd.f32 %v2103, %v2175
      %v2177 = vpop.f32.mrb[0].mxu0
      %v2178 = vpop.f32.mrb[0].mxu0
      %v2179 = vadd.f32 %v2106, %v2178
      %v2180 = vpop.f32.mrb[0].mxu0
      %2181 = vmatprep.mubr.bf16.mxu0 %v1725
      %2182 = vmatmul.mubr.bf16.gmra.mrb[0].mxu0 %v1724
      %v2183 = vpop.f32.mrb[0].mxu0
      %v2184 = vadd.f32 %v2111, %v2183
      %v2185 = vpop.f32.mrb[0].mxu0
      %v2186 = vpop.f32.mrb[0].mxu0
      %v2187 = vadd.f32 %v2114, %v2186
      %v2188 = vpop.f32.mrb[0].mxu0
      %2189 = vdwg.mxu0
      %2190 = vmatprep.subr.bf16.mxu0 0
      %2191 = vmatpush1.bf16.msra.mxu0 %v962
      %2192 = vmatprep.subr.bf16.mxu0 0
      %2193 = vmatpush1.bf16.msra.mxu0 %v963
      %2194 = vmatprep.subr.bf16.mxu0 0
      %2195 = vmatpush1.bf16.msra.mxu0 %v964
      %2196 = vmatprep.subr.bf16.mxu0 0
      %2197 = vmatpush1.bf16.msra.mxu0 %v965
      %2198 = vmatprep.subr.bf16.mxu0 0
      %2199 = vmatpush1.bf16.msra.mxu0 %v966
      %2200 = vmatprep.subr.bf16.mxu0 0
      %2201 = vmatpush1.bf16.msra.mxu0 %v967
      %2202 = vmatprep.subr.bf16.mxu0 0
      %2203 = vmatpush1.bf16.msra.mxu0 %v968
      %2204 = vmatprep.subr.bf16.mxu0 0
      %2205 = vmatpush1.bf16.msra.mxu0 %v969
      %2206 = vmatprep.subr.bf16.mxu0 0
      %2207 = vmatpush1.bf16.msra.mxu0 %v970
      %2208 = vmatprep.subr.bf16.mxu0 0
      %2209 = vmatpush1.bf16.msra.mxu0 %v971
      %2210 = vmatprep.subr.bf16.mxu0 0
      %2211 = vmatpush1.bf16.msra.mxu0 %v972
      %2212 = vmatprep.subr.bf16.mxu0 0
      %2213 = vmatpush1.bf16.msra.mxu0 %v973
      %2214 = vmatprep.subr.bf16.mxu0 0
      %2215 = vmatpush1.bf16.msra.mxu0 %v974
      %2216 = vmatprep.subr.bf16.mxu0 0
      %2217 = vmatpush1.bf16.msra.mxu0 %v975
      %2218 = vmatprep.subr.bf16.mxu0 0
      %2219 = vmatpush1.bf16.msra.mxu0 %v976
      %2220 = vmatprep.subr.bf16.mxu0 0
      %2221 = vmatpush1.bf16.msra.mxu0 %v977
      %2222 = vmatprep.mubr.bf16.mxu0 %v1607
      %2223 = vmatmul.mubr.bf16.gmra.mrb[0].mxu0 %v1606
      %v2224 = vpop.f32.mrb[0].mxu0
      %v2225 = vadd.f32 %v2152, %v2224
      %v2226 = vpop.f32.mrb[0].mxu0
      %v2227 = vpop.f32.mrb[0].mxu0
      %v2228 = vadd.f32 %v2155, %v2227
      %v2229 = vpop.f32.mrb[0].mxu0
      %2230 = vmatprep.mubr.bf16.mxu0 %v1637
      %2231 = vmatmul.mubr.bf16.gmra.mrb[0].mxu0 %v1636
      %v2232 = vpop.f32.mrb[0].mxu0
      %v2233 = vadd.f32 %v2160, %v2232
      %v2234 = vpop.f32.mrb[0].mxu0
      %v2235 = vpop.f32.mrb[0].mxu0
      %v2236 = vadd.f32 %v2163, %v2235
      %v2237 = vpop.f32.mrb[0].mxu0
      %2238 = vmatprep.mubr.bf16.mxu0 %v1667
      %2239 = vmatmul.mubr.bf16.gmra.mrb[0].mxu0 %v1666
      %v2240 = vpop.f32.mrb[0].mxu0
      %v2241 = vadd.f32 %v2168, %v2240
      %v2242 = vpop.f32.mrb[0].mxu0
      %v2243 = vpop.f32.mrb[0].mxu0
      %v2244 = vadd.f32 %v2171, %v2243
      %v2245 = vpop.f32.mrb[0].mxu0
      %2246 = vmatprep.mubr.bf16.mxu0 %v1697
      %2247 = vmatmul.mubr.bf16.gmra.mrb[0].mxu0 %v1696
      %v2248 = vpop.f32.mrb[0].mxu0
      %v2249 = vadd.f32 %v2176, %v2248
      %v2250 = vpop.f32.mrb[0].mxu0
      %v2251 = vpop.f32.mrb[0].mxu0
      %v2252 = vadd.f32 %v2179, %v2251
      %v2253 = vpop.f32.mrb[0].mxu0
      %2254 = vmatprep.mubr.bf16.mxu0 %v1727
      %2255 = vmatmul.mubr.bf16.gmra.mrb[0].mxu0 %v1726
      %v2256 = vpop.f32.mrb[0].mxu0
      %v2257 = vadd.f32 %v2184, %v2256
      %v2258 = vpop.f32.mrb[0].mxu0
      %v2259 = vpop.f32.mrb[0].mxu0
      %v2260 = vadd.f32 %v2187, %v2259
      %v2261 = vpop.f32.mrb[0].mxu0
      %2262 = vdwg.mxu0
      %2263 = vmatprep.subr.bf16.mxu0 0
      %2264 = vmatpush1.bf16.msra.mxu0 %v978
      %2265 = vmatprep.subr.bf16.mxu0 0
      %2266 = vmatpush1.bf16.msra.mxu0 %v979
      %2267 = vmatprep.subr.bf16.mxu0 0
      %2268 = vmatpush1.bf16.msra.mxu0 %v980
      %2269 = vmatprep.subr.bf16.mxu0 0
      %2270 = vmatpush1.bf16.msra.mxu0 %v981
      %2271 = vmatprep.subr.bf16.mxu0 0
      %2272 = vmatpush1.bf16.msra.mxu0 %v982
      %2273 = vmatprep.subr.bf16.mxu0 0
      %2274 = vmatpush1.bf16.msra.mxu0 %v983
      %2275 = vmatprep.subr.bf16.mxu0 0
      %2276 = vmatpush1.bf16.msra.mxu0 %v984
      %2277 = vmatprep.subr.bf16.mxu0 0
      %2278 = vmatpush1.bf16.msra.mxu0 %v985
      %2279 = vmatprep.subr.bf16.mxu0 0
      %2280 = vmatpush1.bf16.msra.mxu0 %v986
      %2281 = vmatprep.subr.bf16.mxu0 0
      %2282 = vmatpush1.bf16.msra.mxu0 %v987
      %2283 = vmatprep.subr.bf16.mxu0 0
      %2284 = vmatpush1.bf16.msra.mxu0 %v988
      %2285 = vmatprep.subr.bf16.mxu0 0
      %2286 = vmatpush1.bf16.msra.mxu0 %v989
      %2287 = vmatprep.subr.bf16.mxu0 0
      %2288 = vmatpush1.bf16.msra.mxu0 %v990
      %2289 = vmatprep.subr.bf16.mxu0 0
      %2290 = vmatpush1.bf16.msra.mxu0 %v991
      %2291 = vmatprep.subr.bf16.mxu0 0
      %2292 = vmatpush1.bf16.msra.mxu0 %v992
      %2293 = vmatprep.subr.bf16.mxu0 0
      %2294 = vmatpush1.bf16.msra.mxu0 %v993
      %2295 = vmatprep.mubr.bf16.mxu0 %v1609
      %2296 = vmatmul.mubr.bf16.gmra.mrb[0].mxu0 %v1608
      %v2297 = vpop.f32.mrb[0].mxu0
      %v2298 = vadd.f32 %v2225, %v2297
      %v2299 = vpop.f32.mrb[0].mxu0
      %v2300 = vpop.f32.mrb[0].mxu0
      %v2301 = vadd.f32 %v2228, %v2300
      %v2302 = vpop.f32.mrb[0].mxu0
      %2303 = vmatprep.mubr.bf16.mxu0 %v1639
      %2304 = vmatmul.mubr.bf16.gmra.mrb[0].mxu0 %v1638
      %v2305 = vpop.f32.mrb[0].mxu0
      %v2306 = vadd.f32 %v2233, %v2305
      %v2307 = vpop.f32.mrb[0].mxu0
      %v2308 = vpop.f32.mrb[0].mxu0
      %v2309 = vadd.f32 %v2236, %v2308
      %v2310 = vpop.f32.mrb[0].mxu0
      %2311 = vmatprep.mubr.bf16.mxu0 %v1669
      %2312 = vmatmul.mubr.bf16.gmra.mrb[0].mxu0 %v1668
      %v2313 = vpop.f32.mrb[0].mxu0
      %v2314 = vadd.f32 %v2241, %v2313
      %v2315 = vpop.f32.mrb[0].mxu0
      %v2316 = vpop.f32.mrb[0].mxu0
      %v2317 = vadd.f32 %v2244, %v2316
      %v2318 = vpop.f32.mrb[0].mxu0
      %2319 = vmatprep.mubr.bf16.mxu0 %v1699
      %2320 = vmatmul.mubr.bf16.gmra.mrb[0].mxu0 %v1698
      %v2321 = vpop.f32.mrb[0].mxu0
      %v2322 = vadd.f32 %v2249, %v2321
      %v2323 = vpop.f32.mrb[0].mxu0
      %v2324 = vpop.f32.mrb[0].mxu0
      %v2325 = vadd.f32 %v2252, %v2324
      %v2326 = vpop.f32.mrb[0].mxu0
      %2327 = vmatprep.mubr.bf16.mxu0 %v1729
      %2328 = vmatmul.mubr.bf16.gmra.mrb[0].mxu0 %v1728
      %v2329 = vpop.f32.mrb[0].mxu0
      %v2330 = vadd.f32 %v2257, %v2329
      %v2331 = vpop.f32.mrb[0].mxu0
      %v2332 = vpop.f32.mrb[0].mxu0
      %v2333 = vadd.f32 %v2260, %v2332
      %v2334 = vpop.f32.mrb[0].mxu0
      %2335 = vdwg.mxu0
      %2336 = vmatprep.subr.bf16.mxu0 0
      %2337 = vmatpush1.bf16.msra.mxu0 %v994
      %2338 = vmatprep.subr.bf16.mxu0 0
      %2339 = vmatpush1.bf16.msra.mxu0 %v995
      %2340 = vmatprep.subr.bf16.mxu0 0
      %2341 = vmatpush1.bf16.msra.mxu0 %v996
      %2342 = vmatprep.subr.bf16.mxu0 0
      %2343 = vmatpush1.bf16.msra.mxu0 %v997
      %2344 = vmatprep.subr.bf16.mxu0 0
      %2345 = vmatpush1.bf16.msra.mxu0 %v998
      %2346 = vmatprep.subr.bf16.mxu0 0
      %2347 = vmatpush1.bf16.msra.mxu0 %v999
      %2348 = vmatprep.subr.bf16.mxu0 0
      %2349 = vmatpush1.bf16.msra.mxu0 %v1000
      %2350 = vmatprep.subr.bf16.mxu0 0
      %2351 = vmatpush1.bf16.msra.mxu0 %v1001
      %2352 = vmatprep.subr.bf16.mxu0 0
      %2353 = vmatpush1.bf16.msra.mxu0 %v1002
      %2354 = vmatprep.subr.bf16.mxu0 0
      %2355 = vmatpush1.bf16.msra.mxu0 %v1003
      %2356 = vmatprep.subr.bf16.mxu0 0
      %2357 = vmatpush1.bf16.msra.mxu0 %v1004
      %2358 = vmatprep.subr.bf16.mxu0 0
      %2359 = vmatpush1.bf16.msra.mxu0 %v1005
      %2360 = vmatprep.subr.bf16.mxu0 0
      %2361 = vmatpush1.bf16.msra.mxu0 %v1006
      %2362 = vmatprep.subr.bf16.mxu0 0
      %2363 = vmatpush1.bf16.msra.mxu0 %v1007
      %2364 = vmatprep.subr.bf16.mxu0 0
      %2365 = vmatpush1.bf16.msra.mxu0 %v1008
      %2366 = vmatprep.subr.bf16.mxu0 0
      %2367 = vmatpush1.bf16.msra.mxu0 %v1009
      %2368 = vmatprep.mubr.bf16.mxu0 %v1611
      %2369 = vmatmul.mubr.bf16.gmra.mrb[0].mxu0 %v1610
      %v2370 = vpop.f32.mrb[0].mxu0
      %v2371 = vadd.f32 %v2298, %v2370
      %v2372 = vpop.f32.mrb[0].mxu0
      %v2373 = vpop.f32.mrb[0].mxu0
      %v2374 = vadd.f32 %v2301, %v2373
      %v2375 = vpop.f32.mrb[0].mxu0
      %2376 = vmatprep.mubr.bf16.mxu0 %v1641
      %2377 = vmatmul.mubr.bf16.gmra.mrb[0].mxu0 %v1640
      %v2378 = vpop.f32.mrb[0].mxu0
      %v2379 = vadd.f32 %v2306, %v2378
      %v2380 = vpop.f32.mrb[0].mxu0
      %v2381 = vpop.f32.mrb[0].mxu0
      %v2382 = vadd.f32 %v2309, %v2381
      %v2383 = vpop.f32.mrb[0].mxu0
      %2384 = vmatprep.mubr.bf16.mxu0 %v1671
      %2385 = vmatmul.mubr.bf16.gmra.mrb[0].mxu0 %v1670
      %v2386 = vpop.f32.mrb[0].mxu0
      %v2387 = vadd.f32 %v2314, %v2386
      %v2388 = vpop.f32.mrb[0].mxu0
      %v2389 = vpop.f32.mrb[0].mxu0
      %v2390 = vadd.f32 %v2317, %v2389
      %v2391 = vpop.f32.mrb[0].mxu0
      %2392 = vmatprep.mubr.bf16.mxu0 %v1701
      %2393 = vmatmul.mubr.bf16.gmra.mrb[0].mxu0 %v1700
      %v2394 = vpop.f32.mrb[0].mxu0
      %v2395 = vadd.f32 %v2322, %v2394
      %v2396 = vpop.f32.mrb[0].mxu0
      %v2397 = vpop.f32.mrb[0].mxu0
      %v2398 = vadd.f32 %v2325, %v2397
      %v2399 = vpop.f32.mrb[0].mxu0
      %2400 = vmatprep.mubr.bf16.mxu0 %v1731
      %2401 = vmatmul.mubr.bf16.gmra.mrb[0].mxu0 %v1730
      %v2402 = vpop.f32.mrb[0].mxu0
      %v2403 = vadd.f32 %v2330, %v2402
      %v2404 = vpop.f32.mrb[0].mxu0
      %v2405 = vpop.f32.mrb[0].mxu0
      %v2406 = vadd.f32 %v2333, %v2405
      %v2407 = vpop.f32.mrb[0].mxu0
      %2408 = vdwg.mxu0
      %2409 = vmatprep.subr.bf16.mxu0 0
      %2410 = vmatpush1.bf16.msra.mxu0 %v1010
      %2411 = vmatprep.subr.bf16.mxu0 0
      %2412 = vmatpush1.bf16.msra.mxu0 %v1011
      %2413 = vmatprep.subr.bf16.mxu0 0
      %2414 = vmatpush1.bf16.msra.mxu0 %v1012
      %2415 = vmatprep.subr.bf16.mxu0 0
      %2416 = vmatpush1.bf16.msra.mxu0 %v1013
      %2417 = vmatprep.subr.bf16.mxu0 0
      %2418 = vmatpush1.bf16.msra.mxu0 %v1014
      %2419 = vmatprep.subr.bf16.mxu0 0
      %2420 = vmatpush1.bf16.msra.mxu0 %v1015
      %2421 = vmatprep.subr.bf16.mxu0 0
      %2422 = vmatpush1.bf16.msra.mxu0 %v1016
      %2423 = vmatprep.subr.bf16.mxu0 0
      %2424 = vmatpush1.bf16.msra.mxu0 %v1017
      %2425 = vmatprep.subr.bf16.mxu0 0
      %2426 = vmatpush1.bf16.msra.mxu0 %v1018
      %2427 = vmatprep.subr.bf16.mxu0 0
      %2428 = vmatpush1.bf16.msra.mxu0 %v1019
      %2429 = vmatprep.subr.bf16.mxu0 0
      %2430 = vmatpush1.bf16.msra.mxu0 %v1020
      %2431 = vmatprep.subr.bf16.mxu0 0
      %2432 = vmatpush1.bf16.msra.mxu0 %v1021
      %2433 = vmatprep.subr.bf16.mxu0 0
      %2434 = vmatpush1.bf16.msra.mxu0 %v1022
      %2435 = vmatprep.subr.bf16.mxu0 0
      %2436 = vmatpush1.bf16.msra.mxu0 %v1023
      %2437 = vmatprep.subr.bf16.mxu0 0
      %2438 = vmatpush1.bf16.msra.mxu0 %v1024
      %2439 = vmatprep.subr.bf16.mxu0 0
      %2440 = vmatpush1.bf16.msra.mxu0 %v1025
      %2441 = vmatprep.mubr.bf16.mxu0 %v1613
      %2442 = vmatmul.mubr.bf16.gmra.mrb[0].mxu0 %v1612
      %v2443 = vpop.f32.mrb[0].mxu0
      %v2444 = vadd.f32 %v2371, %v2443
      %v2445 = vpop.f32.mrb[0].mxu0
      %v2446 = vpop.f32.mrb[0].mxu0
      %v2447 = vadd.f32 %v2374, %v2446
      %v2448 = vpop.f32.mrb[0].mxu0
      %2449 = vmatprep.mubr.bf16.mxu0 %v1643
      %2450 = vmatmul.mubr.bf16.gmra.mrb[0].mxu0 %v1642
      %v2451 = vpop.f32.mrb[0].mxu0
      %v2452 = vadd.f32 %v2379, %v2451
      %v2453 = vpop.f32.mrb[0].mxu0
      %v2454 = vpop.f32.mrb[0].mxu0
      %v2455 = vadd.f32 %v2382, %v2454
      %v2456 = vpop.f32.mrb[0].mxu0
      %2457 = vmatprep.mubr.bf16.mxu0 %v1673
      %2458 = vmatmul.mubr.bf16.gmra.mrb[0].mxu0 %v1672
      %v2459 = vpop.f32.mrb[0].mxu0
      %v2460 = vadd.f32 %v2387, %v2459
      %v2461 = vpop.f32.mrb[0].mxu0
      %v2462 = vpop.f32.mrb[0].mxu0
      %v2463 = vadd.f32 %v2390, %v2462
      %v2464 = vpop.f32.mrb[0].mxu0
      %2465 = vmatprep.mubr.bf16.mxu0 %v1703
      %2466 = vmatmul.mubr.bf16.gmra.mrb[0].mxu0 %v1702
      %v2467 = vpop.f32.mrb[0].mxu0
      %v2468 = vadd.f32 %v2395, %v2467
      %v2469 = vpop.f32.mrb[0].mxu0
      %v2470 = vpop.f32.mrb[0].mxu0
      %v2471 = vadd.f32 %v2398, %v2470
      %v2472 = vpop.f32.mrb[0].mxu0
      %2473 = vmatprep.mubr.bf16.mxu0 %v1733
      %2474 = vmatmul.mubr.bf16.gmra.mrb[0].mxu0 %v1732
      %v2475 = vpop.f32.mrb[0].mxu0
      %v2476 = vadd.f32 %v2403, %v2475
      %v2477 = vpop.f32.mrb[0].mxu0
      %v2478 = vpop.f32.mrb[0].mxu0
      %v2479 = vadd.f32 %v2406, %v2478
      %v2480 = vpop.f32.mrb[0].mxu0
      %2481 = vdwg.mxu0
      %2482 = vmatprep.subr.bf16.mxu0 0
      %2483 = vmatpush1.bf16.msra.mxu0 %v1026
      %2484 = vmatprep.subr.bf16.mxu0 0
      %2485 = vmatpush1.bf16.msra.mxu0 %v1027
      %2486 = vmatprep.subr.bf16.mxu0 0
      %2487 = vmatpush1.bf16.msra.mxu0 %v1028
      %2488 = vmatprep.subr.bf16.mxu0 0
      %2489 = vmatpush1.bf16.msra.mxu0 %v1029
      %2490 = vmatprep.subr.bf16.mxu0 0
      %2491 = vmatpush1.bf16.msra.mxu0 %v1030
      %2492 = vmatprep.subr.bf16.mxu0 0
      %2493 = vmatpush1.bf16.msra.mxu0 %v1031
      %2494 = vmatprep.subr.bf16.mxu0 0
      %2495 = vmatpush1.bf16.msra.mxu0 %v1032
      %2496 = vmatprep.subr.bf16.mxu0 0
      %2497 = vmatpush1.bf16.msra.mxu0 %v1033
      %2498 = vmatprep.subr.bf16.mxu0 0
      %2499 = vmatpush1.bf16.msra.mxu0 %v1034
      %2500 = vmatprep.subr.bf16.mxu0 0
      %2501 = vmatpush1.bf16.msra.mxu0 %v1035
      %2502 = vmatprep.subr.bf16.mxu0 0
      %2503 = vmatpush1.bf16.msra.mxu0 %v1036
      %2504 = vmatprep.subr.bf16.mxu0 0
      %2505 = vmatpush1.bf16.msra.mxu0 %v1037
      %2506 = vmatprep.subr.bf16.mxu0 0
      %2507 = vmatpush1.bf16.msra.mxu0 %v1038
      %2508 = vmatprep.subr.bf16.mxu0 0
      %2509 = vmatpush1.bf16.msra.mxu0 %v1039
      %2510 = vmatprep.subr.bf16.mxu0 0
      %2511 = vmatpush1.bf16.msra.mxu0 %v1040
      %2512 = vmatprep.subr.bf16.mxu0 0
      %2513 = vmatpush1.bf16.msra.mxu0 %v1041
      %2514 = vmatprep.mubr.bf16.mxu0 %v1615
      %2515 = vmatmul.mubr.bf16.gmra.mrb[0].mxu0 %v1614
      %v2516 = vpop.f32.mrb[0].mxu0
      %v2517 = vadd.f32 %v2444, %v2516
      %v2518 = vpop.f32.mrb[0].mxu0
      %v2519 = vpop.f32.mrb[0].mxu0
      %v2520 = vadd.f32 %v2447, %v2519
      %v2521 = vpop.f32.mrb[0].mxu0
      %2522 = vmatprep.mubr.bf16.mxu0 %v1645
      %2523 = vmatmul.mubr.bf16.gmra.mrb[0].mxu0 %v1644
      %v2524 = vpop.f32.mrb[0].mxu0
      %v2525 = vadd.f32 %v2452, %v2524
      %v2526 = vpop.f32.mrb[0].mxu0
      %v2527 = vpop.f32.mrb[0].mxu0
      %v2528 = vadd.f32 %v2455, %v2527
      %v2529 = vpop.f32.mrb[0].mxu0
      %2530 = vmatprep.mubr.bf16.mxu0 %v1675
      %2531 = vmatmul.mubr.bf16.gmra.mrb[0].mxu0 %v1674
      %v2532 = vpop.f32.mrb[0].mxu0
      %v2533 = vadd.f32 %v2460, %v2532
      %v2534 = vpop.f32.mrb[0].mxu0
      %v2535 = vpop.f32.mrb[0].mxu0
      %v2536 = vadd.f32 %v2463, %v2535
      %v2537 = vpop.f32.mrb[0].mxu0
      %2538 = vmatprep.mubr.bf16.mxu0 %v1705
      %2539 = vmatmul.mubr.bf16.gmra.mrb[0].mxu0 %v1704
      %v2540 = vpop.f32.mrb[0].mxu0
      %v2541 = vadd.f32 %v2468, %v2540
      %v2542 = vpop.f32.mrb[0].mxu0
      %v2543 = vpop.f32.mrb[0].mxu0
      %v2544 = vadd.f32 %v2471, %v2543
      %v2545 = vpop.f32.mrb[0].mxu0
      %2546 = vmatprep.mubr.bf16.mxu0 %v1735
      %2547 = vmatmul.mubr.bf16.gmra.mrb[0].mxu0 %v1734
      %v2548 = vpop.f32.mrb[0].mxu0
      %v2549 = vadd.f32 %v2476, %v2548
      %v2550 = vpop.f32.mrb[0].mxu0
      %v2551 = vpop.f32.mrb[0].mxu0
      %v2552 = vadd.f32 %v2479, %v2551
      %v2553 = vpop.f32.mrb[0].mxu0
      %2554 = vdwg.mxu0
      %2555 = vmatprep.subr.bf16.mxu0 0
      %2556 = vmatpush1.bf16.msra.mxu0 %v1042
      %2557 = vmatprep.subr.bf16.mxu0 0
      %2558 = vmatpush1.bf16.msra.mxu0 %v1043
      %2559 = vmatprep.subr.bf16.mxu0 0
      %2560 = vmatpush1.bf16.msra.mxu0 %v1044
      %2561 = vmatprep.subr.bf16.mxu0 0
      %2562 = vmatpush1.bf16.msra.mxu0 %v1045
      %2563 = vmatprep.subr.bf16.mxu0 0
      %2564 = vmatpush1.bf16.msra.mxu0 %v1046
      %2565 = vmatprep.subr.bf16.mxu0 0
      %2566 = vmatpush1.bf16.msra.mxu0 %v1047
      %2567 = vmatprep.subr.bf16.mxu0 0
      %2568 = vmatpush1.bf16.msra.mxu0 %v1048
      %2569 = vmatprep.subr.bf16.mxu0 0
      %2570 = vmatpush1.bf16.msra.mxu0 %v1049
      %2571 = vmatprep.subr.bf16.mxu0 0
      %2572 = vmatpush1.bf16.msra.mxu0 %v1050
      %2573 = vmatprep.subr.bf16.mxu0 0
      %2574 = vmatpush1.bf16.msra.mxu0 %v1051
      %2575 = vmatprep.subr.bf16.mxu0 0
      %2576 = vmatpush1.bf16.msra.mxu0 %v1052
      %2577 = vmatprep.subr.bf16.mxu0 0
      %2578 = vmatpush1.bf16.msra.mxu0 %v1053
      %2579 = vmatprep.subr.bf16.mxu0 0
      %2580 = vmatpush1.bf16.msra.mxu0 %v1054
      %2581 = vmatprep.subr.bf16.mxu0 0
      %2582 = vmatpush1.bf16.msra.mxu0 %v1055
      %2583 = vmatprep.subr.bf16.mxu0 0
      %2584 = vmatpush1.bf16.msra.mxu0 %v1056
      %2585 = vmatprep.subr.bf16.mxu0 0
      %2586 = vmatpush1.bf16.msra.mxu0 %v1057
      %2587 = vmatprep.mubr.bf16.mxu0 %v1617
      %2588 = vmatmul.mubr.bf16.gmra.mrb[0].mxu0 %v1616
      %v2589 = vpop.f32.mrb[0].mxu0
      %v2590 = vadd.f32 %v2517, %v2589
      %v2591 = vpop.f32.mrb[0].mxu0
      %v2592 = vpop.f32.mrb[0].mxu0
      %v2593 = vadd.f32 %v2520, %v2592
      %v2594 = vpop.f32.mrb[0].mxu0
      %2595 = vmatprep.mubr.bf16.mxu0 %v1647
      %2596 = vmatmul.mubr.bf16.gmra.mrb[0].mxu0 %v1646
      %v2597 = vpop.f32.mrb[0].mxu0
      %v2598 = vadd.f32 %v2525, %v2597
      %v2599 = vpop.f32.mrb[0].mxu0
      %v2600 = vpop.f32.mrb[0].mxu0
      %v2601 = vadd.f32 %v2528, %v2600
      %v2602 = vpop.f32.mrb[0].mxu0
      %2603 = vmatprep.mubr.bf16.mxu0 %v1677
      %2604 = vmatmul.mubr.bf16.gmra.mrb[0].mxu0 %v1676
      %v2605 = vpop.f32.mrb[0].mxu0
      %v2606 = vadd.f32 %v2533, %v2605
      %v2607 = vpop.f32.mrb[0].mxu0
      %v2608 = vpop.f32.mrb[0].mxu0
      %v2609 = vadd.f32 %v2536, %v2608
      %v2610 = vpop.f32.mrb[0].mxu0
      %2611 = vmatprep.mubr.bf16.mxu0 %v1707
      %2612 = vmatmul.mubr.bf16.gmra.mrb[0].mxu0 %v1706
      %v2613 = vpop.f32.mrb[0].mxu0
      %v2614 = vadd.f32 %v2541, %v2613
      %v2615 = vpop.f32.mrb[0].mxu0
      %v2616 = vpop.f32.mrb[0].mxu0
      %v2617 = vadd.f32 %v2544, %v2616
      %v2618 = vpop.f32.mrb[0].mxu0
      %2619 = vmatprep.mubr.bf16.mxu0 %v1737
      %2620 = vmatmul.mubr.bf16.gmra.mrb[0].mxu0 %v1736
      %v2621 = vpop.f32.mrb[0].mxu0
      %v2622 = vadd.f32 %v2549, %v2621
      %v2623 = vpop.f32.mrb[0].mxu0
      %v2624 = vpop.f32.mrb[0].mxu0
      %v2625 = vadd.f32 %v2552, %v2624
      %v2626 = vpop.f32.mrb[0].mxu0
      %2627 = vdwg.mxu0
      %2628 = vmatprep.subr.bf16.mxu0 0
      %2629 = vmatpush1.bf16.msra.mxu0 %v1058
      %2630 = vmatprep.subr.bf16.mxu0 0
      %2631 = vmatpush1.bf16.msra.mxu0 %v1059
      %2632 = vmatprep.subr.bf16.mxu0 0
      %2633 = vmatpush1.bf16.msra.mxu0 %v1060
      %2634 = vmatprep.subr.bf16.mxu0 0
      %2635 = vmatpush1.bf16.msra.mxu0 %v1061
      %2636 = vmatprep.subr.bf16.mxu0 0
      %2637 = vmatpush1.bf16.msra.mxu0 %v1062
      %2638 = vmatprep.subr.bf16.mxu0 0
      %2639 = vmatpush1.bf16.msra.mxu0 %v1063
      %2640 = vmatprep.subr.bf16.mxu0 0
      %2641 = vmatpush1.bf16.msra.mxu0 %v1064
      %2642 = vmatprep.subr.bf16.mxu0 0
      %2643 = vmatpush1.bf16.msra.mxu0 %v1065
      %2644 = vmatprep.subr.bf16.mxu0 0
      %2645 = vmatpush1.bf16.msra.mxu0 %v1066
      %2646 = vmatprep.subr.bf16.mxu0 0
      %2647 = vmatpush1.bf16.msra.mxu0 %v1067
      %2648 = vmatprep.subr.bf16.mxu0 0
      %2649 = vmatpush1.bf16.msra.mxu0 %v1068
      %2650 = vmatprep.subr.bf16.mxu0 0
      %2651 = vmatpush1.bf16.msra.mxu0 %v1069
      %2652 = vmatprep.subr.bf16.mxu0 0
      %2653 = vmatpush1.bf16.msra.mxu0 %v1070
      %2654 = vmatprep.subr.bf16.mxu0 0
      %2655 = vmatpush1.bf16.msra.mxu0 %v1071
      %2656 = vmatprep.subr.bf16.mxu0 0
      %2657 = vmatpush1.bf16.msra.mxu0 %v1072
      %2658 = vmatprep.subr.bf16.mxu0 0
      %2659 = vmatpush1.bf16.msra.mxu0 %v1073
      %2660 = vmatprep.mubr.bf16.mxu0 %v1619
      %2661 = vmatmul.mubr.bf16.gmra.mrb[0].mxu0 %v1618
      %v2662 = vpop.f32.mrb[0].mxu0
      %v2663 = vadd.f32 %v2590, %v2662
      %v2664 = vpop.f32.mrb[0].mxu0
      %v2665 = vpop.f32.mrb[0].mxu0
      %v2666 = vadd.f32 %v2593, %v2665
      %v2667 = vpop.f32.mrb[0].mxu0
      %2668 = vmatprep.mubr.bf16.mxu0 %v1649
      %2669 = vmatmul.mubr.bf16.gmra.mrb[0].mxu0 %v1648
      %v2670 = vpop.f32.mrb[0].mxu0
      %v2671 = vadd.f32 %v2598, %v2670
      %v2672 = vpop.f32.mrb[0].mxu0
      %v2673 = vpop.f32.mrb[0].mxu0
      %v2674 = vadd.f32 %v2601, %v2673
      %v2675 = vpop.f32.mrb[0].mxu0
      %2676 = vmatprep.mubr.bf16.mxu0 %v1679
      %2677 = vmatmul.mubr.bf16.gmra.mrb[0].mxu0 %v1678
      %v2678 = vpop.f32.mrb[0].mxu0
      %v2679 = vadd.f32 %v2606, %v2678
      %v2680 = vpop.f32.mrb[0].mxu0
      %v2681 = vpop.f32.mrb[0].mxu0
      %v2682 = vadd.f32 %v2609, %v2681
      %v2683 = vpop.f32.mrb[0].mxu0
      %2684 = vmatprep.mubr.bf16.mxu0 %v1709
      %2685 = vmatmul.mubr.bf16.gmra.mrb[0].mxu0 %v1708
      %v2686 = vpop.f32.mrb[0].mxu0
      %v2687 = vadd.f32 %v2614, %v2686
      %v2688 = vpop.f32.mrb[0].mxu0
      %v2689 = vpop.f32.mrb[0].mxu0
      %v2690 = vadd.f32 %v2617, %v2689
      %v2691 = vpop.f32.mrb[0].mxu0
      %2692 = vmatprep.mubr.bf16.mxu0 %v1739
      %2693 = vmatmul.mubr.bf16.gmra.mrb[0].mxu0 %v1738
      %v2694 = vpop.f32.mrb[0].mxu0
      %v2695 = vadd.f32 %v2622, %v2694
      %v2696 = vpop.f32.mrb[0].mxu0
      %v2697 = vpop.f32.mrb[0].mxu0
      %v2698 = vadd.f32 %v2625, %v2697
      %v2699 = vpop.f32.mrb[0].mxu0
      %2700 = vdwg.mxu0
      %2701 = vmatprep.subr.bf16.mxu0 0
      %2702 = vmatpush1.bf16.msra.mxu0 %v1074
      %2703 = vmatprep.subr.bf16.mxu0 0
      %2704 = vmatpush1.bf16.msra.mxu0 %v1075
      %2705 = vmatprep.subr.bf16.mxu0 0
      %2706 = vmatpush1.bf16.msra.mxu0 %v1076
      %2707 = vmatprep.subr.bf16.mxu0 0
      %2708 = vmatpush1.bf16.msra.mxu0 %v1077
      %2709 = vmatprep.subr.bf16.mxu0 0
      %2710 = vmatpush1.bf16.msra.mxu0 %v1078
      %2711 = vmatprep.subr.bf16.mxu0 0
      %2712 = vmatpush1.bf16.msra.mxu0 %v1079
      %2713 = vmatprep.subr.bf16.mxu0 0
      %2714 = vmatpush1.bf16.msra.mxu0 %v1080
      %2715 = vmatprep.subr.bf16.mxu0 0
      %2716 = vmatpush1.bf16.msra.mxu0 %v1081
      %2717 = vmatprep.subr.bf16.mxu0 0
      %2718 = vmatpush1.bf16.msra.mxu0 %v1082
      %2719 = vmatprep.subr.bf16.mxu0 0
      %2720 = vmatpush1.bf16.msra.mxu0 %v1083
      %2721 = vmatprep.subr.bf16.mxu0 0
      %2722 = vmatpush1.bf16.msra.mxu0 %v1084
      %2723 = vmatprep.subr.bf16.mxu0 0
      %2724 = vmatpush1.bf16.msra.mxu0 %v1085
      %2725 = vmatprep.subr.bf16.mxu0 0
      %2726 = vmatpush1.bf16.msra.mxu0 %v1086
      %2727 = vmatprep.subr.bf16.mxu0 0
      %2728 = vmatpush1.bf16.msra.mxu0 %v1087
      %2729 = vmatprep.subr.bf16.mxu0 0
      %2730 = vmatpush1.bf16.msra.mxu0 %v1088
      %2731 = vmatprep.subr.bf16.mxu0 0
      %2732 = vmatpush1.bf16.msra.mxu0 %v1089
      %2733 = vmatprep.mubr.bf16.mxu0 %v1621
      %2734 = vmatmul.mubr.bf16.gmra.mrb[0].mxu0 %v1620
      %v2735 = vpop.f32.mrb[0].mxu0
      %v2736 = vadd.f32 %v2663, %v2735
      %v2737 = vpop.f32.mrb[0].mxu0
      %v2738 = vpop.f32.mrb[0].mxu0
      %v2739 = vadd.f32 %v2666, %v2738
      %v2740 = vpop.f32.mrb[0].mxu0
      %2741 = vmatprep.mubr.bf16.mxu0 %v1651
      %2742 = vmatmul.mubr.bf16.gmra.mrb[0].mxu0 %v1650
      %v2743 = vpop.f32.mrb[0].mxu0
      %v2744 = vadd.f32 %v2671, %v2743
      %v2745 = vpop.f32.mrb[0].mxu0
      %v2746 = vpop.f32.mrb[0].mxu0
      %v2747 = vadd.f32 %v2674, %v2746
      %v2748 = vpop.f32.mrb[0].mxu0
      %2749 = vmatprep.mubr.bf16.mxu0 %v1681
      %2750 = vmatmul.mubr.bf16.gmra.mrb[0].mxu0 %v1680
      %v2751 = vpop.f32.mrb[0].mxu0
      %v2752 = vadd.f32 %v2679, %v2751
      %v2753 = vpop.f32.mrb[0].mxu0
      %v2754 = vpop.f32.mrb[0].mxu0
      %v2755 = vadd.f32 %v2682, %v2754
      %v2756 = vpop.f32.mrb[0].mxu0
      %2757 = vmatprep.mubr.bf16.mxu0 %v1711
      %2758 = vmatmul.mubr.bf16.gmra.mrb[0].mxu0 %v1710
      %v2759 = vpop.f32.mrb[0].mxu0
      %v2760 = vadd.f32 %v2687, %v2759
      %v2761 = vpop.f32.mrb[0].mxu0
      %v2762 = vpop.f32.mrb[0].mxu0
      %v2763 = vadd.f32 %v2690, %v2762
      %v2764 = vpop.f32.mrb[0].mxu0
      %2765 = vmatprep.mubr.bf16.mxu0 %v1741
      %2766 = vmatmul.mubr.bf16.gmra.mrb[0].mxu0 %v1740
      %v2767 = vpop.f32.mrb[0].mxu0
      %v2768 = vadd.f32 %v2695, %v2767
      %v2769 = vpop.f32.mrb[0].mxu0
      %v2770 = vpop.f32.mrb[0].mxu0
      %v2771 = vadd.f32 %v2698, %v2770
      %v2772 = vpop.f32.mrb[0].mxu0
      %2773 = vdwg.mxu0
      %2774 = vmatprep.subr.bf16.mxu0 0
      %2775 = vmatpush1.bf16.msra.mxu0 %v1090
      %2776 = vmatprep.subr.bf16.mxu0 0
      %2777 = vmatpush1.bf16.msra.mxu0 %v1091
      %2778 = vmatprep.subr.bf16.mxu0 0
      %2779 = vmatpush1.bf16.msra.mxu0 %v1092
      %2780 = vmatprep.subr.bf16.mxu0 0
      %2781 = vmatpush1.bf16.msra.mxu0 %v1093
      %2782 = vmatprep.subr.bf16.mxu0 0
      %2783 = vmatpush1.bf16.msra.mxu0 %v1094
      %2784 = vmatprep.subr.bf16.mxu0 0
      %2785 = vmatpush1.bf16.msra.mxu0 %v1095
      %2786 = vmatprep.subr.bf16.mxu0 0
      %2787 = vmatpush1.bf16.msra.mxu0 %v1096
      %2788 = vmatprep.subr.bf16.mxu0 0
      %2789 = vmatpush1.bf16.msra.mxu0 %v1097
      %2790 = vmatprep.subr.bf16.mxu0 0
      %2791 = vmatpush1.bf16.msra.mxu0 %v1098
      %2792 = vmatprep.subr.bf16.mxu0 0
      %2793 = vmatpush1.bf16.msra.mxu0 %v1099
      %2794 = vmatprep.subr.bf16.mxu0 0
      %2795 = vmatpush1.bf16.msra.mxu0 %v1100
      %2796 = vmatprep.subr.bf16.mxu0 0
      %2797 = vmatpush1.bf16.msra.mxu0 %v1101
      %2798 = vmatprep.subr.bf16.mxu0 0
      %2799 = vmatpush1.bf16.msra.mxu0 %v1102
      %2800 = vmatprep.subr.bf16.mxu0 0
      %2801 = vmatpush1.bf16.msra.mxu0 %v1103
      %2802 = vmatprep.subr.bf16.mxu0 0
      %2803 = vmatpush1.bf16.msra.mxu0 %v1104
      %2804 = vmatprep.subr.bf16.mxu0 0
      %2805 = vmatpush1.bf16.msra.mxu0 %v1105
      %2806 = vmatprep.mubr.bf16.mxu0 %v1623
      %2807 = vmatmul.mubr.bf16.gmra.mrb[0].mxu0 %v1622
      %v2808 = vpop.f32.mrb[0].mxu0
      %v2809 = vadd.f32 %v2736, %v2808
      %v2810 = vpop.f32.mrb[0].mxu0
      %v2811 = vpop.f32.mrb[0].mxu0
      %v2812 = vadd.f32 %v2739, %v2811
      %v2813 = vpop.f32.mrb[0].mxu0
      %2814 = vmatprep.mubr.bf16.mxu0 %v1653
      %2815 = vmatmul.mubr.bf16.gmra.mrb[0].mxu0 %v1652
      %v2816 = vpop.f32.mrb[0].mxu0
      %v2817 = vadd.f32 %v2744, %v2816
      %v2818 = vpop.f32.mrb[0].mxu0
      %v2819 = vpop.f32.mrb[0].mxu0
      %v2820 = vadd.f32 %v2747, %v2819
      %v2821 = vpop.f32.mrb[0].mxu0
      %2822 = vmatprep.mubr.bf16.mxu0 %v1683
      %2823 = vmatmul.mubr.bf16.gmra.mrb[0].mxu0 %v1682
      %v2824 = vpop.f32.mrb[0].mxu0
      %v2825 = vadd.f32 %v2752, %v2824
      %v2826 = vpop.f32.mrb[0].mxu0
      %v2827 = vpop.f32.mrb[0].mxu0
      %v2828 = vadd.f32 %v2755, %v2827
      %v2829 = vpop.f32.mrb[0].mxu0
      %2830 = vmatprep.mubr.bf16.mxu0 %v1713
      %2831 = vmatmul.mubr.bf16.gmra.mrb[0].mxu0 %v1712
      %v2832 = vpop.f32.mrb[0].mxu0
      %v2833 = vadd.f32 %v2760, %v2832
      %v2834 = vpop.f32.mrb[0].mxu0
      %v2835 = vpop.f32.mrb[0].mxu0
      %v2836 = vadd.f32 %v2763, %v2835
      %v2837 = vpop.f32.mrb[0].mxu0
      %2838 = vmatprep.mubr.bf16.mxu0 %v1743
      %2839 = vmatmul.mubr.bf16.gmra.mrb[0].mxu0 %v1742
      %v2840 = vpop.f32.mrb[0].mxu0
      %v2841 = vadd.f32 %v2768, %v2840
      %v2842 = vpop.f32.mrb[0].mxu0
      %v2843 = vpop.f32.mrb[0].mxu0
      %v2844 = vadd.f32 %v2771, %v2843
      %v2845 = vpop.f32.mrb[0].mxu0
      %2846 = vdwg.mxu0
      %2847 = vmatprep.subr.bf16.mxu0 0
      %2848 = vmatpush1.bf16.msra.mxu0 %v1106
      %2849 = vmatprep.subr.bf16.mxu0 0
      %2850 = vmatpush1.bf16.msra.mxu0 %v1107
      %2851 = vmatprep.subr.bf16.mxu0 0
      %2852 = vmatpush1.bf16.msra.mxu0 %v1108
      %2853 = vmatprep.subr.bf16.mxu0 0
      %2854 = vmatpush1.bf16.msra.mxu0 %v1109
      %2855 = vmatprep.subr.bf16.mxu0 0
      %2856 = vmatpush1.bf16.msra.mxu0 %v1110
      %2857 = vmatprep.subr.bf16.mxu0 0
      %2858 = vmatpush1.bf16.msra.mxu0 %v1111
      %2859 = vmatprep.subr.bf16.mxu0 0
      %2860 = vmatpush1.bf16.msra.mxu0 %v1112
      %2861 = vmatprep.subr.bf16.mxu0 0
      %2862 = vmatpush1.bf16.msra.mxu0 %v1113
      %2863 = vmatprep.subr.bf16.mxu0 0
      %2864 = vmatpush1.bf16.msra.mxu0 %v1114
      %2865 = vmatprep.subr.bf16.mxu0 0
      %2866 = vmatpush1.bf16.msra.mxu0 %v1115
      %2867 = vmatprep.subr.bf16.mxu0 0
      %2868 = vmatpush1.bf16.msra.mxu0 %v1116
      %2869 = vmatprep.subr.bf16.mxu0 0
      %2870 = vmatpush1.bf16.msra.mxu0 %v1117
      %2871 = vmatprep.subr.bf16.mxu0 0
      %2872 = vmatpush1.bf16.msra.mxu0 %v1118
      %2873 = vmatprep.subr.bf16.mxu0 0
      %2874 = vmatpush1.bf16.msra.mxu0 %v1119
      %2875 = vmatprep.subr.bf16.mxu0 0
      %2876 = vmatpush1.bf16.msra.mxu0 %v1120
      %2877 = vmatprep.subr.bf16.mxu0 0
      %2878 = vmatpush1.bf16.msra.mxu0 %v1121
      %2879 = vmatprep.mubr.bf16.mxu0 %v1625
      %2880 = vmatmul.mubr.bf16.gmra.mrb[0].mxu0 %v1624
      %v2881 = vpop.f32.mrb[0].mxu0
      %v2882 = vadd.f32 %v2809, %v2881
      %v2883 = vpop.f32.mrb[0].mxu0
      %v2884 = vpop.f32.mrb[0].mxu0
      %v2885 = vadd.f32 %v2812, %v2884
      %v2886 = vpop.f32.mrb[0].mxu0
      %2887 = vmatprep.mubr.bf16.mxu0 %v1655
      %2888 = vmatmul.mubr.bf16.gmra.mrb[0].mxu0 %v1654
      %v2889 = vpop.f32.mrb[0].mxu0
      %v2890 = vadd.f32 %v2817, %v2889
      %v2891 = vpop.f32.mrb[0].mxu0
      %v2892 = vpop.f32.mrb[0].mxu0
      %v2893 = vadd.f32 %v2820, %v2892
      %v2894 = vpop.f32.mrb[0].mxu0
      %2895 = vmatprep.mubr.bf16.mxu0 %v1685
      %2896 = vmatmul.mubr.bf16.gmra.mrb[0].mxu0 %v1684
      %v2897 = vpop.f32.mrb[0].mxu0
      %v2898 = vadd.f32 %v2825, %v2897
      %v2899 = vpop.f32.mrb[0].mxu0
      %v2900 = vpop.f32.mrb[0].mxu0
      %v2901 = vadd.f32 %v2828, %v2900
      %v2902 = vpop.f32.mrb[0].mxu0
      %2903 = vmatprep.mubr.bf16.mxu0 %v1715
      %2904 = vmatmul.mubr.bf16.gmra.mrb[0].mxu0 %v1714
      %v2905 = vpop.f32.mrb[0].mxu0
      %v2906 = vadd.f32 %v2833, %v2905
      %v2907 = vpop.f32.mrb[0].mxu0
      %v2908 = vpop.f32.mrb[0].mxu0
      %v2909 = vadd.f32 %v2836, %v2908
      %v2910 = vpop.f32.mrb[0].mxu0
      %2911 = vmatprep.mubr.bf16.mxu0 %v1745
      %2912 = vmatmul.mubr.bf16.gmra.mrb[0].mxu0 %v1744
      %v2913 = vpop.f32.mrb[0].mxu0
      %v2914 = vadd.f32 %v2841, %v2913
      %v2915 = vpop.f32.mrb[0].mxu0
      %v2916 = vpop.f32.mrb[0].mxu0
      %v2917 = vadd.f32 %v2844, %v2916
      %v2918 = vpop.f32.mrb[0].mxu0
      %2919 = vdwg.mxu0
      %2920 = vmatprep.subr.bf16.mxu0 0
      %2921 = vmatpush1.bf16.msra.mxu0 %v1122
      %2922 = vmatprep.subr.bf16.mxu0 0
      %2923 = vmatpush1.bf16.msra.mxu0 %v1123
      %2924 = vmatprep.subr.bf16.mxu0 0
      %2925 = vmatpush1.bf16.msra.mxu0 %v1124
      %2926 = vmatprep.subr.bf16.mxu0 0
      %2927 = vmatpush1.bf16.msra.mxu0 %v1125
      %2928 = vmatprep.subr.bf16.mxu0 0
      %2929 = vmatpush1.bf16.msra.mxu0 %v1126
      %2930 = vmatprep.subr.bf16.mxu0 0
      %2931 = vmatpush1.bf16.msra.mxu0 %v1127
      %2932 = vmatprep.subr.bf16.mxu0 0
      %2933 = vmatpush1.bf16.msra.mxu0 %v1128
      %2934 = vmatprep.subr.bf16.mxu0 0
      %2935 = vmatpush1.bf16.msra.mxu0 %v1129
      %2936 = vmatprep.subr.bf16.mxu0 0
      %2937 = vmatpush1.bf16.msra.mxu0 %v1130
      %2938 = vmatprep.subr.bf16.mxu0 0
      %2939 = vmatpush1.bf16.msra.mxu0 %v1131
      %2940 = vmatprep.subr.bf16.mxu0 0
      %2941 = vmatpush1.bf16.msra.mxu0 %v1132
      %2942 = vmatprep.subr.bf16.mxu0 0
      %2943 = vmatpush1.bf16.msra.mxu0 %v1133
      %2944 = vmatprep.subr.bf16.mxu0 0
      %2945 = vmatpush1.bf16.msra.mxu0 %v1134
      %2946 = vmatprep.subr.bf16.mxu0 0
      %2947 = vmatpush1.bf16.msra.mxu0 %v1135
      %2948 = vmatprep.subr.bf16.mxu0 0
      %2949 = vmatpush1.bf16.msra.mxu0 %v1136
      %2950 = vmatprep.subr.bf16.mxu0 0
      %2951 = vmatpush1.bf16.msra.mxu0 %v1137
      %2952 = vmatprep.mubr.bf16.mxu0 %v1627
      %2953 = vmatmul.mubr.bf16.gmra.mrb[0].mxu0 %v1626
      %v2954 = vpop.f32.mrb[0].mxu0
      %v2955 = vadd.f32 %v2882, %v2954
      %v2956 = vpop.f32.mrb[0].mxu0
      %v2957 = vpop.f32.mrb[0].mxu0
      %v2958 = vadd.f32 %v2885, %v2957
      %v2959 = vpop.f32.mrb[0].mxu0
      %2960 = vmatprep.mubr.bf16.mxu0 %v1657
      %2961 = vmatmul.mubr.bf16.gmra.mrb[0].mxu0 %v1656
      %v2962 = vpop.f32.mrb[0].mxu0
      %v2963 = vadd.f32 %v2890, %v2962
      %v2964 = vpop.f32.mrb[0].mxu0
      %v2965 = vpop.f32.mrb[0].mxu0
      %v2966 = vadd.f32 %v2893, %v2965
      %v2967 = vpop.f32.mrb[0].mxu0
      %2968 = vmatprep.mubr.bf16.mxu0 %v1687
      %2969 = vmatmul.mubr.bf16.gmra.mrb[0].mxu0 %v1686
      %v2970 = vpop.f32.mrb[0].mxu0
      %v2971 = vadd.f32 %v2898, %v2970
      %v2972 = vpop.f32.mrb[0].mxu0
      %v2973 = vpop.f32.mrb[0].mxu0
      %v2974 = vadd.f32 %v2901, %v2973
      %v2975 = vpop.f32.mrb[0].mxu0
      %2976 = vmatprep.mubr.bf16.mxu0 %v1717
      %2977 = vmatmul.mubr.bf16.gmra.mrb[0].mxu0 %v1716
      %v2978 = vpop.f32.mrb[0].mxu0
      %v2979 = vadd.f32 %v2906, %v2978
      %v2980 = vpop.f32.mrb[0].mxu0
      %v2981 = vpop.f32.mrb[0].mxu0
      %v2982 = vadd.f32 %v2909, %v2981
      %v2983 = vpop.f32.mrb[0].mxu0
      %2984 = vmatprep.mubr.bf16.mxu0 %v1747
      %2985 = vmatmul.mubr.bf16.gmra.mrb[0].mxu0 %v1746
      %v2986 = vpop.f32.mrb[0].mxu0
      %v2987 = vadd.f32 %v2914, %v2986
      %v2988 = vpop.f32.mrb[0].mxu0
      %v2989 = vpop.f32.mrb[0].mxu0
      %v2990 = vadd.f32 %v2917, %v2989
      %v2991 = vpop.f32.mrb[0].mxu0
      %2992 = vdwg.mxu0
      %vm2993 = vcmask 7168
      %2994 = vst.msk [vmem:[%s265] sm:$0xff] %vm2993, %v2955
      %2995 = vst.msk [vmem:[%s265 + $0x8] sm:$0xff] %vm2993, %v2958
      %2996 = vst.msk [vmem:[%s265 + $0x10] sm:$0xff] %vm2993, %v2963
      %2997 = vst.msk [vmem:[%s265 + $0x18] sm:$0xff] %vm2993, %v2966
      %2998 = vst.msk [vmem:[%s265 + $0x20] sm:$0xff] %vm2993, %v2971
      %2999 = vst.msk [vmem:[%s265 + $0x28] sm:$0xff] %vm2993, %v2974
      %3000 = vst.msk [vmem:[%s265 + $0x30] sm:$0xff] %vm2993, %v2979
      %3001 = vst.msk [vmem:[%s265 + $0x38] sm:$0xff] %vm2993, %v2982
      %3002 = vst.msk [vmem:[%s265 + $0x40] sm:$0xff] %vm2993, %v2987
      %3003 = vst.msk [vmem:[%s265 + $0x48] sm:$0xff] %vm2993, %v2990
      %s3004 = smul.u32 10, %s19
      %p3005 = scmp.lt.s32.totalorder %s20, 0
      %s3006 = scalar_select %p3005, %s20, 0
      %p3007 = scmp.lt.s32.totalorder %s3004, 19
      %s3008 = scalar_select %p3007, %s3004, 19
      %p3009 = scmp.lt.s32.totalorder %s21, 0
      %s3010 = scalar_select %p3009, %s21, 0
      %s3011 = sadd.s32 %s3010, %s3008
      %s3012 = smul.addr %s3006, 20
      %s3013 = sadd.s32 %s3011, %s3012
      %s3014 = smul.addr %s3013, 8
      %s3015 = scalar_lea.vmem %s3, %s3014
      // Predicated region
      $region33: #{tpu_custom_call.1} parent=31 // pred_check
        %p3016 = pneg %p135
      $region34: #{tpu_custom_call.1} parent=31 // pred_check_branch
        %3018 = sbr.rel (%p3016) target = $region36
      $region35: #{tpu_custom_call.1} parent=31 // pred_region
        %s3019 = smul.u32 10, %s19
      $region36: #{tpu_custom_call.1} parent=31 // pred_fallthru
        _
    $region32: #{tpu_custom_call.1} parent=5 // pred_fallthru
      _
    %p3020 = scmp.le.s32.totalorder 2, %s9
    // Predicated region
    $region37: #{tpu_custom_call.1} parent=5 // pred_check
      %p3021 = pneg %p3020
    $region38: #{tpu_custom_call.1} parent=5 // pred_check_branch
      %3023 = sbr.rel (%p3021) target = $region40
    $region39: #{tpu_custom_call.1} parent=5 // pred_region
      %s3024 = ssub.s32 %s9, 2
      // Predicated region
      $region41: #{tpu_custom_call.1} parent=39 // pred_check
        %p3025 = pneg %p141
      $region42: #{tpu_custom_call.1} parent=39 // pred_check_branch
        %3027 = sbr.rel (%p3025) target = $region44
      $region43: #{tpu_custom_call.1} parent=39 // pred_region
        %s3028 = smul.u32 10, %s22
        %p3029 = scmp.lt.s32.totalorder %s23, 0
        %s3030 = scalar_select %p3029, %s23, 0
        %p3031 = scmp.lt.s32.totalorder %s3028, 19
        %s3032 = scalar_select %p3031, %s3028, 19
        %p3033 = scmp.lt.s32.totalorder %s24, 0
        %s3034 = scalar_select %p3033, %s24, 0
        %s3035 = sadd.s32 %s3034, %s3032
        %s3036 = smul.addr %s3030, 20
        %s3037 = sadd.s32 %s3035, %s3036
        %s3038 = smul.addr %s3037, 8
        %s3039 = scalar_lea.vmem %s3, %s3038
      $region44: #{tpu_custom_call.1} parent=39 // pred_fallthru
        _
    $region40: #{tpu_custom_call.1} parent=5 // pred_fallthru
      _
  $region6: #{tpu_custom_call.1} parent=0 // loop_footer
    %s13 = sadd.s32 1, %s9
  $region7: #{tpu_custom_call.1} parent=0 // loop_footer_branch
    %8 = sbr.rel target = $region3
  $region8: #{tpu_custom_call.1} parent=0 // loop_exit
    _

</llo_original>
